<compile_context>
chip_gen: v6e
topology: v6e:2x2x1
jax: 0.10.0
libtpu: 0.0.40
codegen_flags: <defaults>
</compile_context>

<pallas_src>
import jax
import jax.numpy as jnp
from jax import lax
from jax.experimental import pallas as pl
from jax.experimental.pallas import tpu as pltpu


def _round_up(x, m):
    return (x + m - 1) // m * m


def lstm_chunk_kernel(x_ref, w_ih_ref, w_hh_ref, b_ref, hs_ref, h_ref, c_ref, xp_ref):
    # x_ref:    (Tc*Bb, in_dim)  time-major input chunk, row = t*Bb + b
    # w_ih_ref: (in_dim, 4*Hp)   W_ih^T (gate order [i,f,g,o], gate-blocked at Hp)
    # w_hh_ref: (Hp, 4*Hp)       W_hh^T
    # b_ref:    (1, 4*Hp)        b_ih + b_hh
    # hs_ref:   (Tc*Bb, Hp)      output hidden states for this chunk (lane-dense)
    # h_ref/c_ref: (Bb, Hp)      VMEM scratch carried across T-chunks
    # xp_ref:   (Tc*Bb, 4*Hp)    VMEM scratch: per-chunk input projection
    Bb, Hp = h_ref.shape
    Tc = x_ref.shape[0] // Bb

    # New batch block starts -> reset the recurrent state.
    @pl.when(pl.program_id(1) == 0)
    def _init():
        h_ref[...] = jnp.zeros_like(h_ref)
        c_ref[...] = jnp.zeros_like(c_ref)

    # Chunk-wide input projection: one MXU matmul, bias folded, staged in VMEM.
    xp_ref[...] = (
        jnp.dot(x_ref[...], w_ih_ref[...], preferred_element_type=jnp.float32)
        + b_ref[...]
    )

    w_hh = w_hh_ref[...]
    mxu_dtype = w_hh.dtype

    def step(t, carry):
        h, c = carry
        row = pl.multiple_of(t * Bb, Bb)                       # sublane-aligned (Bb % 8 == 0)
        gates = xp_ref[pl.ds(row, Bb), :] + jnp.dot(
            h.astype(mxu_dtype), w_hh, preferred_element_type=jnp.float32
        )                                                      # (Bb, 4Hp)
        # Static, 128-aligned lane slices; per-gate activations (EUP work = 4H/step).
        i = jax.nn.sigmoid(gates[:, 0 * Hp:1 * Hp])
        f = jax.nn.sigmoid(gates[:, 1 * Hp:2 * Hp])
        g = jnp.tanh(gates[:, 2 * Hp:3 * Hp])
        o = jax.nn.sigmoid(gates[:, 3 * Hp:4 * Hp])
        c_new = f * c + i * g
        h_new = o * jnp.tanh(c_new)
        hs_ref[pl.ds(row, Bb), :] = h_new                      # full-vreg aligned store
        return h_new, c_new

    h, c = lax.fori_loop(0, Tc, step, (h_ref[...], c_ref[...]),
                         unroll=min(Tc, 4))
    h_ref[...] = h
    c_ref[...] = c


def lstm_generator_forward(x, params, *, t_chunk=16, batch_block=128, mxu_bf16=False):
    """x: (B, T, in_dim) float32, batch_first (matches the PyTorch module)."""
    B, T, in_dim = x.shape
    H = params["w_hh"].shape[1]
    out_dim = params["w_lin"].shape[0]

    # ---- TPU-friendly padding --------------------------------------------
    Hp = _round_up(H, 128)                          # hidden -> lane multiple
    Bb = min(_round_up(B, 8), _round_up(batch_block, 8))
    Bp = _round_up(B, Bb)
    nB = Bp // Bb
    Tc = max(1, min(t_chunk, T))
    Tp = _round_up(T, Tc)
    nT = Tp // Tc

    cdt = jnp.bfloat16 if mxu_bf16 else x.dtype     # MXU operand dtype

    # Gate-blocked zero padding of the weights (exact: padded gates stay inert).
    def pad_gate_rows(w, cols_pad):
        out = jnp.zeros((4 * Hp, cols_pad), jnp.float32)
        for k in range(4):
            out = out.at[k * Hp:k * Hp + H, :w.shape[1]].set(w[k * H:(k + 1) * H])
        return out

    w_ih_t = pad_gate_rows(params["w_ih"], in_dim).T.astype(cdt)   # (in, 4Hp)
    w_hh_t = pad_gate_rows(params["w_hh"], Hp).T.astype(cdt)       # (Hp, 4Hp)
    b = params["b_ih"] + params["b_hh"]                            # (4H,)
    b_p = jnp.zeros((4 * Hp,), jnp.float32)
    for k in range(4):
        b_p = b_p.at[k * Hp:k * Hp + H].set(b[k * H:(k + 1) * H])
    b_row = b_p.reshape(1, 4 * Hp)

    # Input: pad batch/time with zeros (causal recurrence -> real outputs unaffected),
    # then lay out time-major inside each batch block: (nB, Tp*Bb, in), row = t*Bb + b.
    x_p = jnp.zeros((Bp, Tp, in_dim), x.dtype).at[:B, :T].set(x).astype(cdt)
    x_tm = (x_p.reshape(nB, Bb, Tp, in_dim)
                .transpose(0, 2, 1, 3)
                .reshape(nB, Tp * Bb, in_dim))

    # ---- VMEM budget (explicit: v7x scoped default is 32 MiB / 64 MiB physical) ----
    op_item = 2 if mxu_bf16 else 4
    w_bytes = (in_dim * 4 * Hp + Hp * 4 * Hp) * op_item + 4 * Hp * 4
    buf_bytes = 2 * Tc * Bb * (in_dim * op_item + Hp * 4)          # double-buffered x + hs
    scratch_bytes = (2 * Bb * Hp + Tc * Bb * 4 * Hp) * 4           # h, c, xp
    vmem_limit = int(min(48 << 20,
                         max(4 << 20, 2 * w_bytes + buf_bytes + scratch_bytes + (2 << 20))))

    hs = pl.pallas_call(
        lstm_chunk_kernel,
        out_shape=jax.ShapeDtypeStruct((nB, Tp * Bb, Hp), jnp.float32),
        grid_spec=pltpu.PrefetchScalarGridSpec(
            num_scalar_prefetch=0,
            grid=(nB, nT),                       # (batch blocks, T chunks)
            in_specs=[
                pl.BlockSpec((pl.Squeezed(), Tc * Bb, in_dim),
                             lambda bi, ti: (bi, ti, 0)),
                pl.BlockSpec((in_dim, 4 * Hp), lambda bi, ti: (0, 0)),   # resident
                pl.BlockSpec((Hp, 4 * Hp), lambda bi, ti: (0, 0)),       # resident
                pl.BlockSpec((1, 4 * Hp), lambda bi, ti: (0, 0)),        # resident
            ],
            out_specs=pl.BlockSpec((pl.Squeezed(), Tc * Bb, Hp),
                                   lambda bi, ti: (bi, ti, 0)),
            scratch_shapes=[
                pltpu.VMEM((Bb, Hp), jnp.float32),            # h carry
                pltpu.VMEM((Bb, Hp), jnp.float32),            # c carry
                pltpu.VMEM((Tc * Bb, 4 * Hp), jnp.float32),   # per-chunk input projection
            ],
        ),
        compiler_params=pltpu.CompilerParams(
            dimension_semantics=("parallel", "arbitrary"),
            vmem_limit_bytes=vmem_limit,
        ),
    )(x_tm, w_ih_t, w_hh_t, b_row)

    # Undo the block layout, drop padding, and apply the tiny final Linear in XLA
    # (keeps the kernel output lane-dense instead of masked 4-wide stores).
    hs = (hs.reshape(nB, Tp, Bb, Hp)
            .transpose(0, 2, 1, 3)
            .reshape(Bp, Tp, Hp)[:B, :T, :H])                      # (B, T, H)
    y = jnp.einsum("bth,oh->bto", hs, params["w_lin"]) + params["b_lin"]
    return y.astype(x.dtype)


def init_params(key, in_dim, hidden_dim, out_dim):
    """Deterministic synthetic init matching PyTorch LSTM/Linear shapes."""
    k = 1.0 / jnp.sqrt(hidden_dim)
    keys = jax.random.split(key, 6)
    u = lambda kk, shp: jax.random.uniform(kk, shp, jnp.float32, -k, k)
    return {
        "w_ih": u(keys[0], (4 * hidden_dim, in_dim)),      # weight_ih_l0, gates [i,f,g,o]
        "w_hh": u(keys[1], (4 * hidden_dim, hidden_dim)),  # weight_hh_l0
        "b_ih": u(keys[2], (4 * hidden_dim,)),
        "b_hh": u(keys[3], (4 * hidden_dim,)),
        "w_lin": u(keys[4], (out_dim, hidden_dim)),        # final Linear
        "b_lin": u(keys[5], (out_dim,)),
        # TODO(synk): self.linear0 (in_dim -> hidden_dim) is unused in forward(); omitted.
    }


def lstm_generator_reference(x, params):
    """Pure-JAX reference of the same forward pass (for correctness check)."""
    B, T, _ = x.shape
    H = params["w_hh"].shape[1]
    w_ih_t = params["w_ih"].T
    w_hh_t = params["w_hh"].T
    b = params["b_ih"] + params["b_hh"]

    def step(carry, x_t):
        h, c = carry
        gates = x_t @ w_ih_t + h @ w_hh_t + b
        i = jax.nn.sigmoid(gates[:, 0 * H:1 * H])
        f = jax.nn.sigmoid(gates[:, 1 * H:2 * H])
        g = jnp.tanh(gates[:, 2 * H:3 * H])
        o = jax.nn.sigmoid(gates[:, 3 * H:4 * H])
        c = f * c + i * g
        h = o * jnp.tanh(c)
        return (h, c), h

    h0 = jnp.zeros((B, H), jnp.float32)
    c0 = jnp.zeros((B, H), jnp.float32)
    _, hs = lax.scan(step, (h0, c0), jnp.transpose(x, (1, 0, 2)))
    y = hs @ params["w_lin"].T + params["b_lin"]               # (T, B, out_dim)
    return jnp.transpose(y, (1, 0, 2))


if __name__ == "__main__":
    B, T, IN_DIM, HIDDEN, OUT_DIM = 2, 8, 4, 32, 4

    key = jax.random.PRNGKey(0)
    kx, kp = jax.random.split(key)
    x = jax.random.normal(kx, (B, T, IN_DIM), jnp.float32)
    params = init_params(kp, IN_DIM, HIDDEN, OUT_DIM)

    # t_chunk=4 -> 2 grid steps along T: exercises the h/c carry across chunks.
    out = lstm_generator_forward(x, params, t_chunk=4)
    out = jax.block_until_ready(out)

    ref = lstm_generator_reference(x, params)
    assert out.shape == (B, T, OUT_DIM)
    assert jnp.allclose(out, ref, rtol=1e-4, atol=1e-4)

    print("KERNEL_OK")
</pallas_src>

<mosaic_0001>
module attributes {stable_mosaic.version = 11 : i64} {
  func.func @lstm_chunk_kernel(%arg0: i32, %arg1: i32, %arg2: memref<1x32x4xf32, #tpu.memory_space<vmem>>, %arg3: memref<4x512xf32, #tpu.memory_space<vmem>>, %arg4: memref<128x512xf32, #tpu.memory_space<vmem>>, %arg5: memref<1x512xf32, #tpu.memory_space<vmem>>, %arg6: memref<1x32x128xf32, #tpu.memory_space<vmem>>, %arg7: memref<8x128xf32, #tpu.memory_space<vmem>>, %arg8: memref<8x128xf32, #tpu.memory_space<vmem>>, %arg9: memref<32x512xf32, #tpu.memory_space<vmem>>) attributes {dimension_semantics = [#tpu.dimension_semantics<parallel>, #tpu.dimension_semantics<arbitrary>], iteration_bounds = array<i64: 1, 2>, scalar_prefetch = 0 : i64, scratch_operands = 3 : i64, tpu.core_type = #tpu.core_type<tc>, window_params = [{transform_indices = @transform_0, window_bounds = array<i64: 1, 32, 4>}, {pipeline_mode = #tpu.pipeline_mode<synchronous>, transform_indices = @transform_1, window_bounds = array<i64: 4, 512>}, {pipeline_mode = #tpu.pipeline_mode<synchronous>, transform_indices = @transform_2, window_bounds = array<i64: 128, 512>}, {pipeline_mode = #tpu.pipeline_mode<synchronous>, transform_indices = @transform_3, window_bounds = array<i64: 1, 512>}, {transform_indices = @transform_4, window_bounds = array<i64: 1, 32, 128>}]} {
    %c0_i32 = arith.constant 0 : i32
    %0 = arith.cmpi eq, %arg1, %c0_i32 : i32
    %1 = arith.extui %0 : i1 to i32
    %c0_i32_0 = arith.constant 0 : i32
    %2 = arith.cmpi ne, %1, %c0_i32_0 : i32
    scf.if %2 {
      %cst_51 = arith.constant 0.000000e+00 : f32
      %156 = vector.broadcast %cst_51 : f32 to vector<8x128xf32>
      %c0_52 = arith.constant 0 : index
      %c0_53 = arith.constant 0 : index
      %157 = vector.load %arg7[%c0_52, %c0_53] : memref<8x128xf32, #tpu.memory_space<vmem>>, vector<8x128xf32>
      tpu.vector_store %arg7[%c0_52, %c0_53], %156 {strides = array<i32>} : memref<8x128xf32, #tpu.memory_space<vmem>>, vector<8x128xf32>,
      %cst_54 = arith.constant 0.000000e+00 : f32
      %158 = vector.broadcast %cst_54 : f32 to vector<8x128xf32>
      %c0_55 = arith.constant 0 : index
      %c0_56 = arith.constant 0 : index
      %159 = vector.load %arg8[%c0_55, %c0_56] : memref<8x128xf32, #tpu.memory_space<vmem>>, vector<8x128xf32>
      tpu.vector_store %arg8[%c0_55, %c0_56], %158 {strides = array<i32>} : memref<8x128xf32, #tpu.memory_space<vmem>>, vector<8x128xf32>,
    } else {
    }
    %c0 = arith.constant 0 : index
    %c0_1 = arith.constant 0 : index
    %c0_2 = arith.constant 0 : index
    %3 = vector.load %arg2[%c0, %c0_1, %c0_2] : memref<1x32x4xf32, #tpu.memory_space<vmem>>, vector<1x32x4xf32>
    %4 = vector.shape_cast %3 : vector<1x32x4xf32> to vector<32x4xf32>
    %c0_3 = arith.constant 0 : index
    %c0_4 = arith.constant 0 : index
    %5 = vector.load %arg3[%c0_3, %c0_4] : memref<4x512xf32, #tpu.memory_space<vmem>>, vector<4x512xf32>
    %cst = arith.constant dense<0.000000e+00> : vector<32x512xf32>
    %6 = tpu.matmul %4, %5, %cst {dimension_numbers = #tpu.dot_dimension_numbers<[1], [0], [0], [1], [0, 0, 1, 1], [], []>} : vector<32x4xf32>, vector<4x512xf32>, vector<32x512xf32> -> vector<32x512xf32>
    %c0_5 = arith.constant 0 : index
    %c0_6 = arith.constant 0 : index
    %7 = vector.load %arg5[%c0_5, %c0_6] : memref<1x512xf32, #tpu.memory_space<vmem>>, vector<1x512xf32>
    %8 = vector.broadcast %7 : vector<1x512xf32> to vector<32x512xf32>
    %9 = arith.addf %6, %8 : vector<32x512xf32>
    %c0_7 = arith.constant 0 : index
    %c0_8 = arith.constant 0 : index
    %10 = vector.load %arg9[%c0_7, %c0_8] : memref<32x512xf32, #tpu.memory_space<vmem>>, vector<32x512xf32>
    tpu.vector_store %arg9[%c0_7, %c0_8], %9 {strides = array<i32>} : memref<32x512xf32, #tpu.memory_space<vmem>>, vector<32x512xf32>,
    %c0_9 = arith.constant 0 : index
    %c0_10 = arith.constant 0 : index
    %11 = vector.load %arg4[%c0_9, %c0_10] : memref<128x512xf32, #tpu.memory_space<vmem>>, vector<128x512xf32>
    %c0_11 = arith.constant 0 : index
    %c0_12 = arith.constant 0 : index
    %12 = vector.load %arg7[%c0_11, %c0_12] : memref<8x128xf32, #tpu.memory_space<vmem>>, vector<8x128xf32>
    %c0_13 = arith.constant 0 : index
    %c0_14 = arith.constant 0 : index
    %13 = vector.load %arg8[%c0_13, %c0_14] : memref<8x128xf32, #tpu.memory_space<vmem>>, vector<8x128xf32>
    %c0_i32_15 = arith.constant 0 : i32
    %c8_i32 = arith.constant 8 : i32
    %14 = arith.muli %c0_i32_15, %c8_i32 : i32
    %15 = tpu.assume_multiple %14, 8 : i32
    %16 = arith.index_cast %15 : i32 to index
    %c0_16 = arith.constant 0 : index
    %17 = vector.load %arg9[%16, %c0_16] : memref<32x512xf32, #tpu.memory_space<vmem>>, vector<8x512xf32>
    %cst_17 = arith.constant dense<0.000000e+00> : vector<8x512xf32>
    %18 = tpu.matmul %12, %11, %cst_17 {dimension_numbers = #tpu.dot_dimension_numbers<[1], [0], [0], [1], [0, 0, 1, 1], [], []>} : vector<8x128xf32>, vector<128x512xf32>, vector<8x512xf32> -> vector<8x512xf32>
    %19 = arith.addf %17, %18 : vector<8x512xf32>
    %20 = vector.extract_strided_slice %19 {offsets = [0, 0], sizes = [8, 128], strides = [1, 1]} : vector<8x512xf32> to vector<8x128xf32>
    %21 = arith.negf %20 : vector<8x128xf32>
    %22 = math.exp %21 : vector<8x128xf32>
    %cst_18 = arith.constant 1.000000e+00 : f32
    %23 = vector.broadcast %cst_18 : f32 to vector<8x128xf32>
    %24 = arith.addf %23, %22 : vector<8x128xf32>
    %25 = arith.divf %23, %24 : vector<8x128xf32>
    %26 = vector.extract_strided_slice %19 {offsets = [0, 128], sizes = [8, 128], strides = [1, 1]} : vector<8x512xf32> to vector<8x128xf32>
    %27 = arith.negf %26 : vector<8x128xf32>
    %28 = math.exp %27 : vector<8x128xf32>
    %cst_19 = arith.constant 1.000000e+00 : f32
    %29 = vector.broadcast %cst_19 : f32 to vector<8x128xf32>
    %30 = arith.addf %29, %28 : vector<8x128xf32>
    %31 = arith.divf %29, %30 : vector<8x128xf32>
    %32 = vector.extract_strided_slice %19 {offsets = [0, 256], sizes = [8, 128], strides = [1, 1]} : vector<8x512xf32> to vector<8x128xf32>
    %33 = math.tanh %32 : vector<8x128xf32>
    %34 = vector.extract_strided_slice %19 {offsets = [0, 384], sizes = [8, 128], strides = [1, 1]} : vector<8x512xf32> to vector<8x128xf32>
    %35 = arith.negf %34 : vector<8x128xf32>
    %36 = math.exp %35 : vector<8x128xf32>
    %cst_20 = arith.constant 1.000000e+00 : f32
    %37 = vector.broadcast %cst_20 : f32 to vector<8x128xf32>
    %38 = arith.addf %37, %36 : vector<8x128xf32>
    %39 = arith.divf %37, %38 : vector<8x128xf32>
    %40 = arith.mulf %31, %13 : vector<8x128xf32>
    %41 = arith.mulf %25, %33 : vector<8x128xf32>
    %42 = arith.addf %40, %41 : vector<8x128xf32>
    %43 = math.tanh %42 : vector<8x128xf32>
    %44 = arith.mulf %39, %43 : vector<8x128xf32>
    %c0_21 = arith.constant 0 : index
    %45 = arith.index_cast %15 : i32 to index
    %c0_22 = arith.constant 0 : index
    %46 = vector.load %arg6[%c0_21, %45, %c0_22] : memref<1x32x128xf32, #tpu.memory_space<vmem>>, vector<1x8x128xf32>
    %47 = vector.shape_cast %46 : vector<1x8x128xf32> to vector<8x128xf32>
    %48 = vector.shape_cast %44 : vector<8x128xf32> to vector<1x8x128xf32>
    tpu.vector_store %arg6[%c0_21, %45, %c0_22], %48 {strides = array<i32>} : memref<1x32x128xf32, #tpu.memory_space<vmem>>, vector<1x8x128xf32>,
    %c1_i32 = arith.constant 1 : i32
    %c8_i32_23 = arith.constant 8 : i32
    %49 = arith.muli %c1_i32, %c8_i32_23 : i32
    %50 = tpu.assume_multiple %49, 8 : i32
    %51 = arith.index_cast %50 : i32 to index
    %c0_24 = arith.constant 0 : index
    %52 = vector.load %arg9[%51, %c0_24] : memref<32x512xf32, #tpu.memory_space<vmem>>, vector<8x512xf32>
    %cst_25 = arith.constant dense<0.000000e+00> : vector<8x512xf32>
    %53 = tpu.matmul %44, %11, %cst_25 {dimension_numbers = #tpu.dot_dimension_numbers<[1], [0], [0], [1], [0, 0, 1, 1], [], []>} : vector<8x128xf32>, vector<128x512xf32>, vector<8x512xf32> -> vector<8x512xf32>
    %54 = arith.addf %52, %53 : vector<8x512xf32>
    %55 = vector.extract_strided_slice %54 {offsets = [0, 0], sizes = [8, 128], strides = [1, 1]} : vector<8x512xf32> to vector<8x128xf32>
    %56 = arith.negf %55 : vector<8x128xf32>
    %57 = math.exp %56 : vector<8x128xf32>
    %cst_26 = arith.constant 1.000000e+00 : f32
    %58 = vector.broadcast %cst_26 : f32 to vector<8x128xf32>
    %59 = arith.addf %58, %57 : vector<8x128xf32>
    %60 = arith.divf %58, %59 : vector<8x128xf32>
    %61 = vector.extract_strided_slice %54 {offsets = [0, 128], sizes = [8, 128], strides = [1, 1]} : vector<8x512xf32> to vector<8x128xf32>
    %62 = arith.negf %61 : vector<8x128xf32>
    %63 = math.exp %62 : vector<8x128xf32>
    %cst_27 = arith.constant 1.000000e+00 : f32
    %64 = vector.broadcast %cst_27 : f32 to vector<8x128xf32>
    %65 = arith.addf %64, %63 : vector<8x128xf32>
    %66 = arith.divf %64, %65 : vector<8x128xf32>
    %67 = vector.extract_strided_slice %54 {offsets = [0, 256], sizes = [8, 128], strides = [1, 1]} : vector<8x512xf32> to vector<8x128xf32>
    %68 = math.tanh %67 : vector<8x128xf32>
    %69 = vector.extract_strided_slice %54 {offsets = [0, 384], sizes = [8, 128], strides = [1, 1]} : vector<8x512xf32> to vector<8x128xf32>
    %70 = arith.negf %69 : vector<8x128xf32>
    %71 = math.exp %70 : vector<8x128xf32>
    %cst_28 = arith.constant 1.000000e+00 : f32
    %72 = vector.broadcast %cst_28 : f32 to vector<8x128xf32>
    %73 = arith.addf %72, %71 : vector<8x128xf32>
    %74 = arith.divf %72, %73 : vector<8x128xf32>
    %75 = arith.mulf %66, %42 : vector<8x128xf32>
    %76 = arith.mulf %60, %68 : vector<8x128xf32>
    %77 = arith.addf %75, %76 : vector<8x128xf32>
    %78 = math.tanh %77 : vector<8x128xf32>
    %79 = arith.mulf %74, %78 : vector<8x128xf32>
    %c0_29 = arith.constant 0 : index
    %80 = arith.index_cast %50 : i32 to index
    %c0_30 = arith.constant 0 : index
    %81 = vector.load %arg6[%c0_29, %80, %c0_30] : memref<1x32x128xf32, #tpu.memory_space<vmem>>, vector<1x8x128xf32>
    %82 = vector.shape_cast %81 : vector<1x8x128xf32> to vector<8x128xf32>
    %83 = vector.shape_cast %79 : vector<8x128xf32> to vector<1x8x128xf32>
    tpu.vector_store %arg6[%c0_29, %80, %c0_30], %83 {strides = array<i32>} : memref<1x32x128xf32, #tpu.memory_space<vmem>>, vector<1x8x128xf32>,
    %c2_i32 = arith.constant 2 : i32
    %c8_i32_31 = arith.constant 8 : i32
    %84 = arith.muli %c2_i32, %c8_i32_31 : i32
    %85 = tpu.assume_multiple %84, 8 : i32
    %86 = arith.index_cast %85 : i32 to index
    %c0_32 = arith.constant 0 : index
    %87 = vector.load %arg9[%86, %c0_32] : memref<32x512xf32, #tpu.memory_space<vmem>>, vector<8x512xf32>
    %cst_33 = arith.constant dense<0.000000e+00> : vector<8x512xf32>
    %88 = tpu.matmul %79, %11, %cst_33 {dimension_numbers = #tpu.dot_dimension_numbers<[1], [0], [0], [1], [0, 0, 1, 1], [], []>} : vector<8x128xf32>, vector<128x512xf32>, vector<8x512xf32> -> vector<8x512xf32>
    %89 = arith.addf %87, %88 : vector<8x512xf32>
    %90 = vector.extract_strided_slice %89 {offsets = [0, 0], sizes = [8, 128], strides = [1, 1]} : vector<8x512xf32> to vector<8x128xf32>
    %91 = arith.negf %90 : vector<8x128xf32>
    %92 = math.exp %91 : vector<8x128xf32>
    %cst_34 = arith.constant 1.000000e+00 : f32
    %93 = vector.broadcast %cst_34 : f32 to vector<8x128xf32>
    %94 = arith.addf %93, %92 : vector<8x128xf32>
    %95 = arith.divf %93, %94 : vector<8x128xf32>
    %96 = vector.extract_strided_slice %89 {offsets = [0, 128], sizes = [8, 128], strides = [1, 1]} : vector<8x512xf32> to vector<8x128xf32>
    %97 = arith.negf %96 : vector<8x128xf32>
    %98 = math.exp %97 : vector<8x128xf32>
    %cst_35 = arith.constant 1.000000e+00 : f32
    %99 = vector.broadcast %cst_35 : f32 to vector<8x128xf32>
    %100 = arith.addf %99, %98 : vector<8x128xf32>
    %101 = arith.divf %99, %100 : vector<8x128xf32>
    %102 = vector.extract_strided_slice %89 {offsets = [0, 256], sizes = [8, 128], strides = [1, 1]} : vector<8x512xf32> to vector<8x128xf32>
    %103 = math.tanh %102 : vector<8x128xf32>
    %104 = vector.extract_strided_slice %89 {offsets = [0, 384], sizes = [8, 128], strides = [1, 1]} : vector<8x512xf32> to vector<8x128xf32>
    %105 = arith.negf %104 : vector<8x128xf32>
    %106 = math.exp %105 : vector<8x128xf32>
    %cst_36 = arith.constant 1.000000e+00 : f32
    %107 = vector.broadcast %cst_36 : f32 to vector<8x128xf32>
    %108 = arith.addf %107, %106 : vector<8x128xf32>
    %109 = arith.divf %107, %108 : vector<8x128xf32>
    %110 = arith.mulf %101, %77 : vector<8x128xf32>
    %111 = arith.mulf %95, %103 : vector<8x128xf32>
    %112 = arith.addf %110, %111 : vector<8x128xf32>
    %113 = math.tanh %112 : vector<8x128xf32>
    %114 = arith.mulf %109, %113 : vector<8x128xf32>
    %c0_37 = arith.constant 0 : index
    %115 = arith.index_cast %85 : i32 to index
    %c0_38 = arith.constant 0 : index
    %116 = vector.load %arg6[%c0_37, %115, %c0_38] : memref<1x32x128xf32, #tpu.memory_space<vmem>>, vector<1x8x128xf32>
    %117 = vector.shape_cast %116 : vector<1x8x128xf32> to vector<8x128xf32>
    %118 = vector.shape_cast %114 : vector<8x128xf32> to vector<1x8x128xf32>
    tpu.vector_store %arg6[%c0_37, %115, %c0_38], %118 {strides = array<i32>} : memref<1x32x128xf32, #tpu.memory_space<vmem>>, vector<1x8x128xf32>,
    %c3_i32 = arith.constant 3 : i32
    %c8_i32_39 = arith.constant 8 : i32
    %119 = arith.muli %c3_i32, %c8_i32_39 : i32
    %120 = tpu.assume_multiple %119, 8 : i32
    %121 = arith.index_cast %120 : i32 to index
    %c0_40 = arith.constant 0 : index
    %122 = vector.load %arg9[%121, %c0_40] : memref<32x512xf32, #tpu.memory_space<vmem>>, vector<8x512xf32>
    %cst_41 = arith.constant dense<0.000000e+00> : vector<8x512xf32>
    %123 = tpu.matmul %114, %11, %cst_41 {dimension_numbers = #tpu.dot_dimension_numbers<[1], [0], [0], [1], [0, 0, 1, 1], [], []>} : vector<8x128xf32>, vector<128x512xf32>, vector<8x512xf32> -> vector<8x512xf32>
    %124 = arith.addf %122, %123 : vector<8x512xf32>
    %125 = vector.extract_strided_slice %124 {offsets = [0, 0], sizes = [8, 128], strides = [1, 1]} : vector<8x512xf32> to vector<8x128xf32>
    %126 = arith.negf %125 : vector<8x128xf32>
    %127 = math.exp %126 : vector<8x128xf32>
    %cst_42 = arith.constant 1.000000e+00 : f32
    %128 = vector.broadcast %cst_42 : f32 to vector<8x128xf32>
    %129 = arith.addf %128, %127 : vector<8x128xf32>
    %130 = arith.divf %128, %129 : vector<8x128xf32>
    %131 = vector.extract_strided_slice %124 {offsets = [0, 128], sizes = [8, 128], strides = [1, 1]} : vector<8x512xf32> to vector<8x128xf32>
    %132 = arith.negf %131 : vector<8x128xf32>
    %133 = math.exp %132 : vector<8x128xf32>
    %cst_43 = arith.constant 1.000000e+00 : f32
    %134 = vector.broadcast %cst_43 : f32 to vector<8x128xf32>
    %135 = arith.addf %134, %133 : vector<8x128xf32>
    %136 = arith.divf %134, %135 : vector<8x128xf32>
    %137 = vector.extract_strided_slice %124 {offsets = [0, 256], sizes = [8, 128], strides = [1, 1]} : vector<8x512xf32> to vector<8x128xf32>
    %138 = math.tanh %137 : vector<8x128xf32>
    %139 = vector.extract_strided_slice %124 {offsets = [0, 384], sizes = [8, 128], strides = [1, 1]} : vector<8x512xf32> to vector<8x128xf32>
    %140 = arith.negf %139 : vector<8x128xf32>
    %141 = math.exp %140 : vector<8x128xf32>
    %cst_44 = arith.constant 1.000000e+00 : f32
    %142 = vector.broadcast %cst_44 : f32 to vector<8x128xf32>
    %143 = arith.addf %142, %141 : vector<8x128xf32>
    %144 = arith.divf %142, %143 : vector<8x128xf32>
    %145 = arith.mulf %136, %112 : vector<8x128xf32>
    %146 = arith.mulf %130, %138 : vector<8x128xf32>
    %147 = arith.addf %145, %146 : vector<8x128xf32>
    %148 = math.tanh %147 : vector<8x128xf32>
    %149 = arith.mulf %144, %148 : vector<8x128xf32>
    %c0_45 = arith.constant 0 : index
    %150 = arith.index_cast %120 : i32 to index
    %c0_46 = arith.constant 0 : index
    %151 = vector.load %arg6[%c0_45, %150, %c0_46] : memref<1x32x128xf32, #tpu.memory_space<vmem>>, vector<1x8x128xf32>
    %152 = vector.shape_cast %151 : vector<1x8x128xf32> to vector<8x128xf32>
    %153 = vector.shape_cast %149 : vector<8x128xf32> to vector<1x8x128xf32>
    tpu.vector_store %arg6[%c0_45, %150, %c0_46], %153 {strides = array<i32>} : memref<1x32x128xf32, #tpu.memory_space<vmem>>, vector<1x8x128xf32>,
    %c4_i32 = arith.constant 4 : i32
    %c0_47 = arith.constant 0 : index
    %c0_48 = arith.constant 0 : index
    %154 = vector.load %arg7[%c0_47, %c0_48] : memref<8x128xf32, #tpu.memory_space<vmem>>, vector<8x128xf32>
    tpu.vector_store %arg7[%c0_47, %c0_48], %149 {strides = array<i32>} : memref<8x128xf32, #tpu.memory_space<vmem>>, vector<8x128xf32>,
    %c0_49 = arith.constant 0 : index
    %c0_50 = arith.constant 0 : index
    %155 = vector.load %arg8[%c0_49, %c0_50] : memref<8x128xf32, #tpu.memory_space<vmem>>, vector<8x128xf32>
    tpu.vector_store %arg8[%c0_49, %c0_50], %147 {strides = array<i32>} : memref<8x128xf32, #tpu.memory_space<vmem>>, vector<8x128xf32>,
    return
  }
  func.func @transform_0(%arg0: i32, %arg1: i32) -> (i32, i32, i32) {
    %c0_i32 = arith.constant 0 : i32
    %c0_i32_0 = arith.constant 0 : i32
    return %arg0, %arg1, %c0_i32 : i32, i32, i32
  }
  func.func @transform_1(%arg0: i32, %arg1: i32) -> (i32, i32) {
    %c0_i32 = arith.constant 0 : i32
    %c0_i32_0 = arith.constant 0 : i32
    %c0_i32_1 = arith.constant 0 : i32
    return %c0_i32, %c0_i32_0 : i32, i32
  }
  func.func @transform_2(%arg0: i32, %arg1: i32) -> (i32, i32) {
    %c0_i32 = arith.constant 0 : i32
    %c0_i32_0 = arith.constant 0 : i32
    %c0_i32_1 = arith.constant 0 : i32
    return %c0_i32, %c0_i32_0 : i32, i32
  }
  func.func @transform_3(%arg0: i32, %arg1: i32) -> (i32, i32) {
    %c0_i32 = arith.constant 0 : i32
    %c0_i32_0 = arith.constant 0 : i32
    %c0_i32_1 = arith.constant 0 : i32
    return %c0_i32, %c0_i32_0 : i32, i32
  }
  func.func @transform_4(%arg0: i32, %arg1: i32) -> (i32, i32, i32) {
    %c0_i32 = arith.constant 0 : i32
    %c0_i32_0 = arith.constant 0 : i32
    return %arg0, %arg1, %c0_i32 : i32, i32, i32
  }
}

</mosaic_0001>

<llo_original>
// kernel: tpu_custom_call.1
$region0: #{tpu_custom_call.1}
  #allocation0 [shape = 'u32[]', space=smem, size = 0x4, offset = 0x4, fixed_abs, tag = 'smem constant byte address 0x4 - core index']
  #allocation1 [shape = 'u32[144,128]{1,0:T(1,128)}', space=vmem, size = 0x12000, scoped, tag = 'internal scratch']
  #allocation2 [shape = 'f32[8,128]{1,0:T(8,128)}', space=vmem, size = 0x1000, scoped, tag = 'scratch operand']
  #allocation3 [shape = 'f32[8,128]{1,0:T(8,128)}', space=vmem, size = 0x1000, scoped, tag = 'scratch operand']
  #allocation4 [shape = 'f32[32,512]{1,0:T(8,128)}', space=vmem, size = 0x10000, scoped, tag = 'scratch operand']
  %s0 = inlined_call_operand.vmem [shape: f32[1,64,4], index: 0, kind: input, shape index: {}]
  %s1 = inlined_call_operand.vmem [shape: f32[4,512], index: 1, kind: input, shape index: {}]
  %s2 = inlined_call_operand.hbm [shape: f32[128,512], index: 2, kind: input, shape index: {}]
  %s3 = inlined_call_operand.vmem [shape: f32[1,512], index: 3, kind: input, shape index: {}]
  %s4 = inlined_call_operand.hbm [shape: f32[1,64,128], index: 4, kind: output, shape index: {}]
  %s5 = sld [smem:[#allocation0]]
  $region57: #{tpu_custom_call.1} parent=0
    _
  %s7 = ssub.s32 1, %s5
  %s8 = scalar_select 0, %s7, %s5
  $region1: #{tpu_custom_call.1} parent=0
    #allocation5 [shape = 'u8[262144]{0}', space=vmem, size = 0x40000, scoped, tag = 'input window, operand 2, single buffered']
    #allocation6 [shape = 's32[2]{0}', space=sflag, size = 0x8, scoped, tag = 'scoped memory for tpu_custom_call.1']
    #allocation7 [shape = 's32[2]{0}', space=sflag, size = 0x8, scoped, tag = 'scoped memory for tpu_custom_call.1']
    #allocation8 [shape = 'u8[32768]{0}', space=vmem, size = 0x8000, scoped, tag = 'output window, operand 0']
    %9 = vsyncpa [#allocation6], 0
    %10 = vsyncpa [#allocation7], 0
    %s11 = scalar_lea.sflag [#allocation7], 1
    %12 = vsyncpa %s11, 0
    loop: start=0, step=1, limit=4
    $region2: #{tpu_custom_call.1} parent=1 // loop_pre_header
      _
    $region3: #{tpu_custom_call.1} parent=1 // loop_header
      %s14 = sphi 0, %s18
      %p15 = scmp.ge.s32.totalorder %s14, 4
      %s21 = sphi 0, %s33
      %s22 = sphi 0, %s29
      %s23 = sphi 0, %s21
      %s24 = sphi 0, %s22
      %s25 = sphi 0, %s23
      %s26 = sphi 0, %s24
      %s38 = sphi 0, %s40
      %s41 = sphi 0, %s38
      %s42 = sphi 0, %s41
      %s58 = sphi 0, %s42
      %s62 = sphi 0, %s62
      %s64 = sphi 0, %s62
      %s65 = sphi 0, %s64
      %s79 = sphi 0, %s65
      %s83 = sphi 0, %s83
      %s85 = sphi 0, %s83
      %s86 = sphi 0, %s85
      %s100 = sphi 0, %s86
      %s104 = sphi 0, %s104
      %s106 = sphi 0, %s104
      %s107 = sphi 0, %s106
      %s121 = sphi 0, %s107
      %s129 = sphi 0, %s131
      %s132 = sphi 0, %s129
      %s133 = sphi 0, %s132
      %s149 = sphi 0, %s133
    $region4: #{tpu_custom_call.1} parent=1 // loop_header_branch
      %17 = sbr.rel (%p15) target = $region8
    $region5: #{tpu_custom_call.1} parent=1 // loop_body
      %s19 = ssub.s32 %s14, 1
      %s20 = ssub.s32 %s14, 2
      %s27 = sadd.s32 1, %s22
      %p28 = scmp.ge.s32.totalorder %s27, 2
      %s29 = scalar_select %p28, 0, %s27
      %s30 = sadd.s32 1, %s21
      %s31 = scalar_select %p28, %s30, %s21
      %p32 = scmp.ge.s32.totalorder %s31, 1
      %s33 = scalar_select %p32, 0, %s31
      %s34 = ssub.s32 %s21, %s33
      %s35 = ssub.s32 %s22, %s29
      %s36 = sor.u32 %s34, %s35
      %p37 = scmp.eq.s32.totalorder %s36, 0
      %s39 = sadd.s32 %s38, 1
      %s40 = scalar_select %p37, %s38, %s39
      %p43 = pneg %p37
      %p44 = scmp.eq.s32.totalorder %s14, 1
      %p45 = por %p43, %p44
      %p46 = scmp.ne.s32.totalorder %s38, %s41
      %p47 = scmp.eq.s32.totalorder %s14, 0
      %p48 = por %p46, %p47
      %p49 = scmp.ne.s32.totalorder %s38, %s41
      %p50 = scmp.eq.s32.totalorder %s19, 1
      %p51 = por %p49, %p50
      %p52 = scmp.ne.s32.totalorder %s41, %s42
      %p53 = scmp.eq.s32.totalorder %s19, 0
      %p54 = por %p52, %p53
      %p55 = scmp.ne.s32.totalorder %s41, %s42
      %p56 = scmp.eq.s32.totalorder %s20, 1
      %p57 = por %p55, %p56
      %p59 = scmp.ne.s32.totalorder %s42, %s58
      %p60 = scmp.eq.s32.totalorder %s20, 0
      %p61 = por %p59, %p60
      %s63 = sadd.s32 %s62, 1
      %p66 = scmp.eq.s32.totalorder %s14, 1
      %p67 = scmp.ne.s32.totalorder %s62, %s64
      %p68 = scmp.eq.s32.totalorder %s14, 0
      %p69 = por %p67, %p68
      %p70 = scmp.ne.s32.totalorder %s62, %s64
      %p71 = scmp.eq.s32.totalorder %s19, 1
      %p72 = por %p70, %p71
      %p73 = scmp.ne.s32.totalorder %s64, %s65
      %p74 = scmp.eq.s32.totalorder %s19, 0
      %p75 = por %p73, %p74
      %p76 = scmp.ne.s32.totalorder %s64, %s65
      %p77 = scmp.eq.s32.totalorder %s20, 1
      %p78 = por %p76, %p77
      %p80 = scmp.ne.s32.totalorder %s65, %s79
      %p81 = scmp.eq.s32.totalorder %s20, 0
      %p82 = por %p80, %p81
      %s84 = sadd.s32 %s83, 1
      %p87 = scmp.eq.s32.totalorder %s14, 1
      %p88 = scmp.ne.s32.totalorder %s83, %s85
      %p89 = scmp.eq.s32.totalorder %s14, 0
      %p90 = por %p88, %p89
      %p91 = scmp.ne.s32.totalorder %s83, %s85
      %p92 = scmp.eq.s32.totalorder %s19, 1
      %p93 = por %p91, %p92
      %p94 = scmp.ne.s32.totalorder %s85, %s86
      %p95 = scmp.eq.s32.totalorder %s19, 0
      %p96 = por %p94, %p95
      %p97 = scmp.ne.s32.totalorder %s85, %s86
      %p98 = scmp.eq.s32.totalorder %s20, 1
      %p99 = por %p97, %p98
      %p101 = scmp.ne.s32.totalorder %s86, %s100
      %p102 = scmp.eq.s32.totalorder %s20, 0
      %p103 = por %p101, %p102
      %s105 = sadd.s32 %s104, 1
      %p108 = scmp.eq.s32.totalorder %s14, 1
      %p109 = scmp.ne.s32.totalorder %s104, %s106
      %p110 = scmp.eq.s32.totalorder %s14, 0
      %p111 = por %p109, %p110
      %p112 = scmp.ne.s32.totalorder %s104, %s106
      %p113 = scmp.eq.s32.totalorder %s19, 1
      %p114 = por %p112, %p113
      %p115 = scmp.ne.s32.totalorder %s106, %s107
      %p116 = scmp.eq.s32.totalorder %s19, 0
      %p117 = por %p115, %p116
      %p118 = scmp.ne.s32.totalorder %s106, %s107
      %p119 = scmp.eq.s32.totalorder %s20, 1
      %p120 = por %p118, %p119
      %p122 = scmp.ne.s32.totalorder %s107, %s121
      %p123 = scmp.eq.s32.totalorder %s20, 0
      %p124 = por %p122, %p123
      %s125 = ssub.s32 %s21, %s33
      %s126 = ssub.s32 %s22, %s29
      %s127 = sor.u32 %s125, %s126
      %p128 = scmp.eq.s32.totalorder %s127, 0
      %s130 = sadd.s32 %s129, 1
      %s131 = scalar_select %p128, %s129, %s130
      %p134 = pneg %p128
      %p135 = scmp.eq.s32.totalorder %s14, 1
      %p136 = por %p134, %p135
      %p137 = scmp.ne.s32.totalorder %s129, %s132
      %p138 = scmp.eq.s32.totalorder %s14, 0
      %p139 = por %p137, %p138
      %p140 = scmp.ne.s32.totalorder %s129, %s132
      %p141 = scmp.eq.s32.totalorder %s19, 1
      %p142 = por %p140, %p141
      %p143 = scmp.ne.s32.totalorder %s132, %s133
      %p144 = scmp.eq.s32.totalorder %s19, 0
      %p145 = por %p143, %p144
      %p146 = scmp.ne.s32.totalorder %s132, %s133
      %p147 = scmp.eq.s32.totalorder %s20, 1
      %p148 = por %p146, %p147
      %p150 = scmp.ne.s32.totalorder %s133, %s149
      %p151 = scmp.eq.s32.totalorder %s20, 0
      %p152 = por %p150, %p151
      %p153 = scmp.le.s32.totalorder 1, %s14
      %p154 = scmp.lt.s32.totalorder %s14, 3
      %p155 = pnand %p153, %p154
      %p156 = pneg %p155
      // Predicated region
      $region9: #{tpu_custom_call.1} parent=5 // pred_check
        _
      $region10: #{tpu_custom_call.1} parent=5 // pred_check_branch
        %158 = sbr.rel (%p155) target = $region12
      $region11: #{tpu_custom_call.1} parent=5 // pred_region
        %s159 = ssub.s32 %s14, 1
        // Predicated region
        $region13: #{tpu_custom_call.1} parent=11 // pred_check
          %p160 = pneg %p75
        $region14: #{tpu_custom_call.1} parent=11 // pred_check_branch
          %162 = sbr.rel (%p160) target = $region16
        $region15: #{tpu_custom_call.1} parent=11 // pred_region
          _
        $region16: #{tpu_custom_call.1} parent=11 // pred_fallthru
          _
        // Predicated region
        $region17: #{tpu_custom_call.1} parent=11 // pred_check
          %p163 = pneg %p96
        $region18: #{tpu_custom_call.1} parent=11 // pred_check_branch
          %165 = sbr.rel (%p163) target = $region20
        $region19: #{tpu_custom_call.1} parent=11 // pred_region
          %s167 = ssub.s32 8192, 8192
          %168 = vsyncadd [#allocation6], %s167
          %s169 = sshll.u32 [#allocation5], 4
          %s170 = int_to_ptr.vmem [resolvable:$true] %s169
          %175 = dma.hbm_to_vmem [thread:$0]  %s2, 8192, %s170, [#allocation6], 512, 512, 32
        $region20: #{tpu_custom_call.1} parent=11 // pred_fallthru
          _
        // Predicated region
        $region21: #{tpu_custom_call.1} parent=11 // pred_check
          %p176 = pneg %p117
        $region22: #{tpu_custom_call.1} parent=11 // pred_check_branch
          %178 = sbr.rel (%p176) target = $region24
        $region23: #{tpu_custom_call.1} parent=11 // pred_region
          _
        $region24: #{tpu_custom_call.1} parent=11 // pred_fallthru
          _
      $region12: #{tpu_custom_call.1} parent=5 // pred_fallthru
        _
      %p179 = scmp.lt.s32.totalorder %s14, 2
      // Predicated region
      $region25: #{tpu_custom_call.1} parent=5 // pred_check
        %p180 = pneg %p179
      $region26: #{tpu_custom_call.1} parent=5 // pred_check_branch
        %182 = sbr.rel (%p180) target = $region28
      $region27: #{tpu_custom_call.1} parent=5 // pred_region
        // Predicated region
        $region29: #{tpu_custom_call.1} parent=27 // pred_check
          %p183 = pneg %p48
        $region30: #{tpu_custom_call.1} parent=27 // pred_check_branch
          %185 = sbr.rel (%p183) target = $region32
        $region31: #{tpu_custom_call.1} parent=27 // pred_region
          %s186 = smul.u32 4, %s22
          %p187 = scmp.lt.s32.totalorder %s21, 0
          %s188 = scalar_select %p187, %s21, 0
          %p189 = scmp.lt.s32.totalorder %s186, 7
          %s190 = scalar_select %p189, %s186, 7
          %s191 = smul.addr %s188, 8
          %s192 = sadd.s32 %s190, %s191
          %s193 = smul.addr %s192, 8
          %s194 = scalar_lea.vmem %s0, %s193
          %s195 = smul.u32 4, %s22
        $region32: #{tpu_custom_call.1} parent=27 // pred_fallthru
          _
      $region28: #{tpu_custom_call.1} parent=5 // pred_fallthru
        _
      %p196 = scmp.le.s32.totalorder 1, %s14
      %p197 = scmp.lt.s32.totalorder %s14, 3
      %p198 = pnand %p196, %p197
      %p199 = pneg %p198
      // Predicated region
      $region33: #{tpu_custom_call.1} parent=5 // pred_check
        _
      $region34: #{tpu_custom_call.1} parent=5 // pred_check_branch
        %201 = sbr.rel (%p198) target = $region36
      $region35: #{tpu_custom_call.1} parent=5 // pred_region
        %s202 = ssub.s32 %s14, 1
        // Predicated region
        $region37: #{tpu_custom_call.1} parent=35 // pred_check
          %p203 = pneg %p96
        $region38: #{tpu_custom_call.1} parent=35 // pred_check_branch
          %205 = sbr.rel (%p203) target = $region40
        $region39: #{tpu_custom_call.1} parent=35 // pred_region
          %206 = dma.done [#allocation6], 8192
        $region40: #{tpu_custom_call.1} parent=35 // pred_fallthru
          _
        %s207 = smul.u32 4, %s24
        %p208 = scmp.lt.s32.totalorder %s23, 0
        %s209 = scalar_select %p208, %s23, 0
        %p210 = scmp.lt.s32.totalorder %s207, 7
        %s211 = scalar_select %p210, %s207, 7
        %s212 = smul.addr %s209, 8
        %s213 = sadd.s32 %s211, %s212
        %s214 = smul.addr %s213, 8
        %s215 = scalar_lea.vmem %s0, %s214
        %p216 = pneg %p54
        %p217 = pneg %p51
        %p218 = pneg %p75
        %p219 = pneg %p72
        %p220 = pneg %p96
        %p221 = pneg %p93
        %p222 = pneg %p117
        %p223 = pneg %p114
        %p224 = pneg %p145
        %p225 = pneg %p142
        %s226 = sand.u32 %s132, 1
        %s227 = scalar_lea.sflag [#allocation7], %s226
        %s228 = sand.u32 %s132, 1
        %s229 = smul.addr %s228, 32
        %s230 = scalar_lea.vmem [#allocation8], %s229
        %s231 = smul.u32 4, %s24
        %p232 = scmp.lt.s32.totalorder %s23, 0
        %s233 = scalar_select %p232, %s23, 0
        %p234 = scmp.lt.s32.totalorder %s231, 7
        %s235 = scalar_select %p234, %s231, 7
        %s236 = smul.addr %s233, 8
        %s237 = sadd.s32 %s235, %s236
        %s238 = smul.addr %s237, 8
        %s239 = scalar_lea.vmem %s0, %s238
        %s240 = smul.u32 4, %s24
        %s241 = smul.u32 4, %s24
        %p242 = scmp.eq.s32.totalorder %s24, 0
        // Predicated region
        $region41: #{tpu_custom_call.1} parent=35 // pred_check
          %p243 = pneg %p242
        $region42: #{tpu_custom_call.1} parent=35 // pred_check_branch
          %245 = sbr.rel (%p243) target = $region44
        $region43: #{tpu_custom_call.1} parent=35 // pred_region
          %246 = vst [vmem:[#allocation2] sm:$0xff] 0.0
          %247 = vst [vmem:[#allocation3] sm:$0xff] 0.0
        $region44: #{tpu_custom_call.1} parent=35 // pred_fallthru
          _
        %v248 = vld [vmem:[%s239] sm:$0xff]
        %v249 = vld [vmem:[%s239 + $0x8] sm:$0xff]
        %v250 = vld [vmem:[%s239 + $0x10] sm:$0xff]
        %v251 = vld [vmem:[%s239 + $0x18] sm:$0xff]
        %v252 = vld [vmem:[%s1] sm:$0xff]
        %v253 = vld [vmem:[%s1 + $0x8] sm:$0xff]
        %v254 = vld [vmem:[%s3] sm:$0xf]
        %v256 = vlaneseq
        %v257 = vshrl.u32 %v256, 7
        %v258 = vsub.s32 0, %v257
        %v259 = vrot.slane %v254, %v258
        %v260 = vlaneseq
        %v261 = vshrl.u32 %v260, 7
        %v262 = vsub.s32 1, %v261
        %v263 = vrot.slane %v254, %v262
        %v264 = vlaneseq
        %v265 = vshrl.u32 %v264, 7
        %v266 = vsub.s32 2, %v265
        %v267 = vrot.slane %v254, %v266
        %v268 = vlaneseq
        %v269 = vshrl.u32 %v268, 7
        %v270 = vsub.s32 3, %v269
        %v271 = vrot.slane %v254, %v270
        %v278 = vcombine.high %v252, %v252
        %v279 = vcombine.high %v253, %v253
        %vm280 = vcmask 31744
        %v282 = vsel %vm280, %v248, 0
        %v285 = vsel %vm280, %v249, 0
        %v288 = vsel %vm280, %v250, 0
        %v291 = vsel %vm280, %v251, 0
        %vm293 = vcmask 1043456
        %v294 = vsel %vm293, %v252, 0
        %v296 = vsel %vm293, %v278, 0
        %v298 = vsel %vm293, %v253, 0
        %v300 = vsel %vm293, %v279, 0
        %302 = vmatprep.subr.mxu0 0.0
        %303 = vmatpush1.msra.mxu0 0.0
        %304 = vmatprep.subr.mxu0 0.0
        %305 = vmatpush1.msra.mxu0 0.0
        %306 = vmatprep.subr.mxu0 0.0
        %307 = vmatpush1.msra.mxu0 0.0
        %308 = vmatprep.subr.mxu0 0.0
        %309 = vmatpush1.msra.mxu0 0.0
        %310 = vmatprep.subr.mxu0 0.0
        %311 = vmatpush1.msra.mxu0 0.0
        %312 = vmatprep.subr.mxu0 0.0
        %313 = vmatpush1.msra.mxu0 0.0
        %314 = vmatprep.subr.mxu0 0.0
        %315 = vmatpush1.msra.mxu0 0.0
        %316 = vmatprep.subr.mxu0 0.0
        %317 = vmatpush1.msra.mxu0 0.0
        %318 = vmatprep.subr.mxu0 0.0
        %319 = vmatpush1.msra.mxu0 0.0
        %320 = vmatprep.subr.mxu0 0.0
        %321 = vmatpush1.msra.mxu0 0.0
        %322 = vmatprep.subr.mxu0 0.0
        %323 = vmatpush1.msra.mxu0 0.0
        %324 = vmatprep.subr.mxu0 0.0
        %325 = vmatpush1.msra.mxu0 0.0
        %326 = vmatprep.subr.mxu0 0.0
        %327 = vmatpush1.msra.mxu0 0.0
        %328 = vmatprep.subr.mxu0 0.0
        %329 = vmatpush1.msra.mxu0 0.0
        %330 = vmatprep.subr.mxu0 0.0
        %331 = vmatpush1.msra.mxu0 0.0
        %332 = vmatprep.subr.mxu0 %v296
        %333 = vmatpush1.msra.mxu0 %v294
        %334 = vmatprep.subr.mxu0 0.0
        %335 = vmatpush2.msra.mxu0 0.0
        %336 = vmatprep.subr.mxu0 0.0
        %337 = vmatpush2.msra.mxu0 0.0
        %338 = vmatprep.subr.mxu0 0.0
        %339 = vmatpush2.msra.mxu0 0.0
        %340 = vmatprep.subr.mxu0 0.0
        %341 = vmatpush2.msra.mxu0 0.0
        %342 = vmatprep.subr.mxu0 0.0
        %343 = vmatpush2.msra.mxu0 0.0
        %344 = vmatprep.subr.mxu0 0.0
        %345 = vmatpush2.msra.mxu0 0.0
        %346 = vmatprep.subr.mxu0 0.0
        %347 = vmatpush2.msra.mxu0 0.0
        %348 = vmatprep.subr.mxu0 0.0
        %349 = vmatpush2.msra.mxu0 0.0
        %350 = vmatprep.subr.mxu0 0.0
        %351 = vmatpush2.msra.mxu0 0.0
        %352 = vmatprep.subr.mxu0 0.0
        %353 = vmatpush2.msra.mxu0 0.0
        %354 = vmatprep.subr.mxu0 0.0
        %355 = vmatpush2.msra.mxu0 0.0
        %356 = vmatprep.subr.mxu0 0.0
        %357 = vmatpush2.msra.mxu0 0.0
        %358 = vmatprep.subr.mxu0 0.0
        %359 = vmatpush2.msra.mxu0 0.0
        %360 = vmatprep.subr.mxu0 0.0
        %361 = vmatpush2.msra.mxu0 0.0
        %362 = vmatprep.subr.mxu0 0.0
        %363 = vmatpush2.msra.mxu0 0.0
        %364 = vmatprep.subr.mxu0 0.0
        %365 = vmatpush2.msra.mxu0 0.0
        %366 = vmatprep.mubr.f32.mxu0 0.0
        %367 = vmatmul.mubr.f32.gmra.mxu0 %v282
        %v368 = vpop.f32.mrf.mxu0
        %v369 = vadd.f32 %v259, %v368
        %v370 = vpop.f32.mrf.mxu0
        %v371 = vadd.f32 %v263, %v370
        %372 = vmatprep.mubr.f32.mxu0 0.0
        %373 = vmatmul.mubr.f32.gmra.mxu0 %v285
        %v374 = vpop.f32.mrf.mxu0
        %v375 = vadd.f32 %v259, %v374
        %v376 = vpop.f32.mrf.mxu0
        %v377 = vadd.f32 %v263, %v376
        %378 = vmatprep.mubr.f32.mxu0 0.0
        %379 = vmatmul.mubr.f32.gmra.mxu0 %v288
        %v380 = vpop.f32.mrf.mxu0
        %v381 = vadd.f32 %v259, %v380
        %v382 = vpop.f32.mrf.mxu0
        %v383 = vadd.f32 %v263, %v382
        %384 = vmatprep.mubr.f32.mxu0 0.0
        %385 = vmatmul.mubr.f32.gmra.mxu0 %v291
        %v386 = vpop.f32.mrf.mxu0
        %v387 = vadd.f32 %v259, %v386
        %v388 = vpop.f32.mrf.mxu0
        %v389 = vadd.f32 %v263, %v388
        %390 = vdwg.mxu0
        %391 = vmatprep.subr.mxu0 0.0
        %392 = vmatpush1.msra.mxu0 0.0
        %393 = vmatprep.subr.mxu0 0.0
        %394 = vmatpush1.msra.mxu0 0.0
        %395 = vmatprep.subr.mxu0 0.0
        %396 = vmatpush1.msra.mxu0 0.0
        %397 = vmatprep.subr.mxu0 0.0
        %398 = vmatpush1.msra.mxu0 0.0
        %399 = vmatprep.subr.mxu0 0.0
        %400 = vmatpush1.msra.mxu0 0.0
        %401 = vmatprep.subr.mxu0 0.0
        %402 = vmatpush1.msra.mxu0 0.0
        %403 = vmatprep.subr.mxu0 0.0
        %404 = vmatpush1.msra.mxu0 0.0
        %405 = vmatprep.subr.mxu0 0.0
        %406 = vmatpush1.msra.mxu0 0.0
        %407 = vmatprep.subr.mxu0 0.0
        %408 = vmatpush1.msra.mxu0 0.0
        %409 = vmatprep.subr.mxu0 0.0
        %410 = vmatpush1.msra.mxu0 0.0
        %411 = vmatprep.subr.mxu0 0.0
        %412 = vmatpush1.msra.mxu0 0.0
        %413 = vmatprep.subr.mxu0 0.0
        %414 = vmatpush1.msra.mxu0 0.0
        %415 = vmatprep.subr.mxu0 0.0
        %416 = vmatpush1.msra.mxu0 0.0
        %417 = vmatprep.subr.mxu0 0.0
        %418 = vmatpush1.msra.mxu0 0.0
        %419 = vmatprep.subr.mxu0 0.0
        %420 = vmatpush1.msra.mxu0 0.0
        %421 = vmatprep.subr.mxu0 %v300
        %422 = vmatpush1.msra.mxu0 %v298
        %423 = vmatprep.subr.mxu0 0.0
        %424 = vmatpush2.msra.mxu0 0.0
        %425 = vmatprep.subr.mxu0 0.0
        %426 = vmatpush2.msra.mxu0 0.0
        %427 = vmatprep.subr.mxu0 0.0
        %428 = vmatpush2.msra.mxu0 0.0
        %429 = vmatprep.subr.mxu0 0.0
        %430 = vmatpush2.msra.mxu0 0.0
        %431 = vmatprep.subr.mxu0 0.0
        %432 = vmatpush2.msra.mxu0 0.0
        %433 = vmatprep.subr.mxu0 0.0
        %434 = vmatpush2.msra.mxu0 0.0
        %435 = vmatprep.subr.mxu0 0.0
        %436 = vmatpush2.msra.mxu0 0.0
        %437 = vmatprep.subr.mxu0 0.0
        %438 = vmatpush2.msra.mxu0 0.0
        %439 = vmatprep.subr.mxu0 0.0
        %440 = vmatpush2.msra.mxu0 0.0
        %441 = vmatprep.subr.mxu0 0.0
        %442 = vmatpush2.msra.mxu0 0.0
        %443 = vmatprep.subr.mxu0 0.0
        %444 = vmatpush2.msra.mxu0 0.0
        %445 = vmatprep.subr.mxu0 0.0
        %446 = vmatpush2.msra.mxu0 0.0
        %447 = vmatprep.subr.mxu0 0.0
        %448 = vmatpush2.msra.mxu0 0.0
        %449 = vmatprep.subr.mxu0 0.0
        %450 = vmatpush2.msra.mxu0 0.0
        %451 = vmatprep.subr.mxu0 0.0
        %452 = vmatpush2.msra.mxu0 0.0
        %453 = vmatprep.subr.mxu0 0.0
        %454 = vmatpush2.msra.mxu0 0.0
        %455 = vmatprep.mubr.f32.mxu0 0.0
        %456 = vmatmul.mubr.f32.gmra.mxu0 %v282
        %v457 = vpop.f32.mrf.mxu0
        %v458 = vadd.f32 %v267, %v457
        %v459 = vpop.f32.mrf.mxu0
        %v460 = vadd.f32 %v271, %v459
        %461 = vmatprep.mubr.f32.mxu0 0.0
        %462 = vmatmul.mubr.f32.gmra.mxu0 %v285
        %v463 = vpop.f32.mrf.mxu0
        %v464 = vadd.f32 %v267, %v463
        %v465 = vpop.f32.mrf.mxu0
        %v466 = vadd.f32 %v271, %v465
        %467 = vmatprep.mubr.f32.mxu0 0.0
        %468 = vmatmul.mubr.f32.gmra.mxu0 %v288
        %v469 = vpop.f32.mrf.mxu0
        %v470 = vadd.f32 %v267, %v469
        %v471 = vpop.f32.mrf.mxu0
        %v472 = vadd.f32 %v271, %v471
        %473 = vmatprep.mubr.f32.mxu0 0.0
        %474 = vmatmul.mubr.f32.gmra.mxu0 %v291
        %v475 = vpop.f32.mrf.mxu0
        %v476 = vadd.f32 %v267, %v475
        %v477 = vpop.f32.mrf.mxu0
        %v478 = vadd.f32 %v271, %v477
        %479 = vdwg.mxu0
        %480 = vst [vmem:[#allocation4] sm:$0xff] %v369
        %481 = vst [vmem:[#allocation4 + $0x8] sm:$0xff] %v371
        %482 = vst [vmem:[#allocation4 + $0x10] sm:$0xff] %v458
        %483 = vst [vmem:[#allocation4 + $0x18] sm:$0xff] %v460
        %484 = vst [vmem:[#allocation4 + $0x20] sm:$0xff] %v375
        %485 = vst [vmem:[#allocation4 + $0x28] sm:$0xff] %v377
        %486 = vst [vmem:[#allocation4 + $0x30] sm:$0xff] %v464
        %487 = vst [vmem:[#allocation4 + $0x38] sm:$0xff] %v466
        %488 = vst [vmem:[#allocation4 + $0x40] sm:$0xff] %v381
        %489 = vst [vmem:[#allocation4 + $0x48] sm:$0xff] %v383
        %490 = vst [vmem:[#allocation4 + $0x50] sm:$0xff] %v470
        %491 = vst [vmem:[#allocation4 + $0x58] sm:$0xff] %v472
        %492 = vst [vmem:[#allocation4 + $0x60] sm:$0xff] %v387
        %493 = vst [vmem:[#allocation4 + $0x68] sm:$0xff] %v389
        %494 = vst [vmem:[#allocation4 + $0x70] sm:$0xff] %v476
        %495 = vst [vmem:[#allocation4 + $0x78] sm:$0xff] %v478
        %v496 = vld [vmem:[#allocation5] sm:$0xff]
        %v497 = vld [vmem:[#allocation5 + $0x8] sm:$0xff]
        %v498 = vld [vmem:[#allocation5 + $0x10] sm:$0xff]
        %v499 = vld [vmem:[#allocation5 + $0x18] sm:$0xff]
        %v500 = vld [vmem:[#allocation5 + $0x20] sm:$0xff]
        %v501 = vld [vmem:[#allocation5 + $0x28] sm:$0xff]
        %v502 = vld [vmem:[#allocation5 + $0x30] sm:$0xff]
        %v503 = vld [vmem:[#allocation5 + $0x38] sm:$0xff]
        %v504 = vld [vmem:[#allocation5 + $0x40] sm:$0xff]
        %v505 = vld [vmem:[#allocation5 + $0x48] sm:$0xff]
        %v506 = vld [vmem:[#allocation5 + $0x50] sm:$0xff]
        %v507 = vld [vmem:[#allocation5 + $0x58] sm:$0xff]
        %v508 = vld [vmem:[#allocation5 + $0x60] sm:$0xff]
        %v509 = vld [vmem:[#allocation5 + $0x68] sm:$0xff]
        %v510 = vld [vmem:[#allocation5 + $0x70] sm:$0xff]
        %v511 = vld [vmem:[#allocation5 + $0x78] sm:$0xff]
        %v512 = vld [vmem:[#allocation5 + $0x80] sm:$0xff]
        %v513 = vld [vmem:[#allocation5 + $0x88] sm:$0xff]
        %v514 = vld [vmem:[#allocation5 + $0x90] sm:$0xff]
        %v515 = vld [vmem:[#allocation5 + $0x98] sm:$0xff]
        %v516 = vld [vmem:[#allocation5 + $0xa0] sm:$0xff]
        %v517 = vld [vmem:[#allocation5 + $0xa8] sm:$0xff]
        %v518 = vld [vmem:[#allocation5 + $0xb0] sm:$0xff]
        %v519 = vld [vmem:[#allocation5 + $0xb8] sm:$0xff]
        %v520 = vld [vmem:[#allocation5 + $0xc0] sm:$0xff]
        %v521 = vld [vmem:[#allocation5 + $0xc8] sm:$0xff]
        %v522 = vld [vmem:[#allocation5 + $0xd0] sm:$0xff]
        %v523 = vld [vmem:[#allocation5 + $0xd8] sm:$0xff]
        %v524 = vld [vmem:[#allocation5 + $0xe0] sm:$0xff]
        %v525 = vld [vmem:[#allocation5 + $0xe8] sm:$0xff]
        %v526 = vld [vmem:[#allocation5 + $0xf0] sm:$0xff]
        %v527 = vld [vmem:[#allocation5 + $0xf8] sm:$0xff]
        %v528 = vld [vmem:[#allocation5 + $0x100] sm:$0xff]
        %v529 = vld [vmem:[#allocation5 + $0x108] sm:$0xff]
        %v530 = vld [vmem:[#allocation5 + $0x110] sm:$0xff]
        %v531 = vld [vmem:[#allocation5 + $0x118] sm:$0xff]
        %v532 = vld [vmem:[#allocation5 + $0x120] sm:$0xff]
        %v533 = vld [vmem:[#allocation5 + $0x128] sm:$0xff]
        %v534 = vld [vmem:[#allocation5 + $0x130] sm:$0xff]
        %v535 = vld [vmem:[#allocation5 + $0x138] sm:$0xff]
        %v536 = vld [vmem:[#allocation5 + $0x140] sm:$0xff]
        %v537 = vld [vmem:[#allocation5 + $0x148] sm:$0xff]
        %v538 = vld [vmem:[#allocation5 + $0x150] sm:$0xff]
        %v539 = vld [vmem:[#allocation5 + $0x158] sm:$0xff]
        %v540 = vld [vmem:[#allocation5 + $0x160] sm:$0xff]
        %v541 = vld [vmem:[#allocation5 + $0x168] sm:$0xff]
        %v542 = vld [vmem:[#allocation5 + $0x170] sm:$0xff]
        %v543 = vld [vmem:[#allocation5 + $0x178] sm:$0xff]
        %v544 = vld [vmem:[#allocation5 + $0x180] sm:$0xff]
        %v545 = vld [vmem:[#allocation5 + $0x188] sm:$0xff]
        %v546 = vld [vmem:[#allocation5 + $0x190] sm:$0xff]
        %v547 = vld [vmem:[#allocation5 + $0x198] sm:$0xff]
        %v548 = vld [vmem:[#allocation5 + $0x1a0] sm:$0xff]
        %v549 = vld [vmem:[#allocation5 + $0x1a8] sm:$0xff]
        %v550 = vld [vmem:[#allocation5 + $0x1b0] sm:$0xff]
        %v551 = vld [vmem:[#allocation5 + $0x1b8] sm:$0xff]
        %v552 = vld [vmem:[#allocation5 + $0x1c0] sm:$0xff]
        %v553 = vld [vmem:[#allocation5 + $0x1c8] sm:$0xff]
        %v554 = vld [vmem:[#allocation5 + $0x1d0] sm:$0xff]
        %v555 = vld [vmem:[#allocation5 + $0x1d8] sm:$0xff]
        %v556 = vld [vmem:[#allocation5 + $0x1e0] sm:$0xff]
        %v557 = vld [vmem:[#allocation5 + $0x1e8] sm:$0xff]
        %v558 = vld [vmem:[#allocation5 + $0x1f0] sm:$0xff]
        %v559 = vld [vmem:[#allocation5 + $0x1f8] sm:$0xff]
        %v560 = vld [vmem:[#allocation2] sm:$0xff]
        %v561 = vld [vmem:[#allocation3] sm:$0xff]
        %s562 = smul.u32 0, 4
        %s563 = smul.addr %s562, 8
        %s564 = scalar_lea.vmem [#allocation4], %s563
        %v565 = vld [vmem:[%s564] sm:$0xff]
        %v566 = vld [vmem:[%s564 + $0x8] sm:$0xff]
        %v567 = vld [vmem:[%s564 + $0x10] sm:$0xff]
        %v568 = vld [vmem:[%s564 + $0x18] sm:$0xff]
        %569 = vmatprep.subr.mxu0 %v557
        %570 = vmatpush1.msra.mxu0 %v556
        %571 = vmatprep.subr.mxu0 %v553
        %572 = vmatpush1.msra.mxu0 %v552
        %573 = vmatprep.subr.mxu0 %v549
        %574 = vmatpush1.msra.mxu0 %v548
        %575 = vmatprep.subr.mxu0 %v545
        %576 = vmatpush1.msra.mxu0 %v544
        %577 = vmatprep.subr.mxu0 %v541
        %578 = vmatpush1.msra.mxu0 %v540
        %579 = vmatprep.subr.mxu0 %v537
        %580 = vmatpush1.msra.mxu0 %v536
        %581 = vmatprep.subr.mxu0 %v533
        %582 = vmatpush1.msra.mxu0 %v532
        %583 = vmatprep.subr.mxu0 %v529
        %584 = vmatpush1.msra.mxu0 %v528
        %585 = vmatprep.subr.mxu0 %v525
        %586 = vmatpush1.msra.mxu0 %v524
        %587 = vmatprep.subr.mxu0 %v521
        %588 = vmatpush1.msra.mxu0 %v520
        %589 = vmatprep.subr.mxu0 %v517
        %590 = vmatpush1.msra.mxu0 %v516
        %591 = vmatprep.subr.mxu0 %v513
        %592 = vmatpush1.msra.mxu0 %v512
        %593 = vmatprep.subr.mxu0 %v509
        %594 = vmatpush1.msra.mxu0 %v508
        %595 = vmatprep.subr.mxu0 %v505
        %596 = vmatpush1.msra.mxu0 %v504
        %597 = vmatprep.subr.mxu0 %v501
        %598 = vmatpush1.msra.mxu0 %v500
        %599 = vmatprep.subr.mxu0 %v497
        %600 = vmatpush1.msra.mxu0 %v496
        %601 = vmatprep.subr.mxu0 0.0
        %602 = vmatpush2.msra.mxu0 0.0
        %603 = vmatprep.subr.mxu0 0.0
        %604 = vmatpush2.msra.mxu0 0.0
        %605 = vmatprep.subr.mxu0 0.0
        %606 = vmatpush2.msra.mxu0 0.0
        %607 = vmatprep.subr.mxu0 0.0
        %608 = vmatpush2.msra.mxu0 0.0
        %609 = vmatprep.subr.mxu0 0.0
        %610 = vmatpush2.msra.mxu0 0.0
        %611 = vmatprep.subr.mxu0 0.0
        %612 = vmatpush2.msra.mxu0 0.0
        %613 = vmatprep.subr.mxu0 0.0
        %614 = vmatpush2.msra.mxu0 0.0
        %615 = vmatprep.subr.mxu0 0.0
        %616 = vmatpush2.msra.mxu0 0.0
        %617 = vmatprep.subr.mxu0 0.0
        %618 = vmatpush2.msra.mxu0 0.0
        %619 = vmatprep.subr.mxu0 0.0
        %620 = vmatpush2.msra.mxu0 0.0
        %621 = vmatprep.subr.mxu0 0.0
        %622 = vmatpush2.msra.mxu0 0.0
        %623 = vmatprep.subr.mxu0 0.0
        %624 = vmatpush2.msra.mxu0 0.0
        %625 = vmatprep.subr.mxu0 0.0
        %626 = vmatpush2.msra.mxu0 0.0
        %627 = vmatprep.subr.mxu0 0.0
        %628 = vmatpush2.msra.mxu0 0.0
        %629 = vmatprep.subr.mxu0 0.0
        %630 = vmatpush2.msra.mxu0 0.0
        %631 = vmatprep.subr.mxu0 0.0
        %632 = vmatpush2.msra.mxu0 0.0
        %633 = vmatprep.mubr.f32.mxu0 0.0
        %634 = vmatmul.mubr.f32.gmra.mxu0 %v560
        %v635 = vpop.f32.mrf.mxu0
        %v636 = vadd.f32 0.0, %v635
        %v637 = vpop.f32.mrf.mxu0
        %v638 = vadd.f32 0.0, %v637
        %639 = vdwg.mxu0
        %640 = vmatprep.subr.mxu0 %v559
        %641 = vmatpush1.msra.mxu0 %v558
        %642 = vmatprep.subr.mxu0 %v555
        %643 = vmatpush1.msra.mxu0 %v554
        %644 = vmatprep.subr.mxu0 %v551
        %645 = vmatpush1.msra.mxu0 %v550
        %646 = vmatprep.subr.mxu0 %v547
        %647 = vmatpush1.msra.mxu0 %v546
        %648 = vmatprep.subr.mxu0 %v543
        %649 = vmatpush1.msra.mxu0 %v542
        %650 = vmatprep.subr.mxu0 %v539
        %651 = vmatpush1.msra.mxu0 %v538
        %652 = vmatprep.subr.mxu0 %v535
        %653 = vmatpush1.msra.mxu0 %v534
        %654 = vmatprep.subr.mxu0 %v531
        %655 = vmatpush1.msra.mxu0 %v530
        %656 = vmatprep.subr.mxu0 %v527
        %657 = vmatpush1.msra.mxu0 %v526
        %658 = vmatprep.subr.mxu0 %v523
        %659 = vmatpush1.msra.mxu0 %v522
        %660 = vmatprep.subr.mxu0 %v519
        %661 = vmatpush1.msra.mxu0 %v518
        %662 = vmatprep.subr.mxu0 %v515
        %663 = vmatpush1.msra.mxu0 %v514
        %664 = vmatprep.subr.mxu0 %v511
        %665 = vmatpush1.msra.mxu0 %v510
        %666 = vmatprep.subr.mxu0 %v507
        %667 = vmatpush1.msra.mxu0 %v506
        %668 = vmatprep.subr.mxu0 %v503
        %669 = vmatpush1.msra.mxu0 %v502
        %670 = vmatprep.subr.mxu0 %v499
        %671 = vmatpush1.msra.mxu0 %v498
        %672 = vmatprep.subr.mxu0 0.0
        %673 = vmatpush2.msra.mxu0 0.0
        %674 = vmatprep.subr.mxu0 0.0
        %675 = vmatpush2.msra.mxu0 0.0
        %676 = vmatprep.subr.mxu0 0.0
        %677 = vmatpush2.msra.mxu0 0.0
        %678 = vmatprep.subr.mxu0 0.0
        %679 = vmatpush2.msra.mxu0 0.0
        %680 = vmatprep.subr.mxu0 0.0
        %681 = vmatpush2.msra.mxu0 0.0
        %682 = vmatprep.subr.mxu0 0.0
        %683 = vmatpush2.msra.mxu0 0.0
        %684 = vmatprep.subr.mxu0 0.0
        %685 = vmatpush2.msra.mxu0 0.0
        %686 = vmatprep.subr.mxu0 0.0
        %687 = vmatpush2.msra.mxu0 0.0
        %688 = vmatprep.subr.mxu0 0.0
        %689 = vmatpush2.msra.mxu0 0.0
        %690 = vmatprep.subr.mxu0 0.0
        %691 = vmatpush2.msra.mxu0 0.0
        %692 = vmatprep.subr.mxu0 0.0
        %693 = vmatpush2.msra.mxu0 0.0
        %694 = vmatprep.subr.mxu0 0.0
        %695 = vmatpush2.msra.mxu0 0.0
        %696 = vmatprep.subr.mxu0 0.0
        %697 = vmatpush2.msra.mxu0 0.0
        %698 = vmatprep.subr.mxu0 0.0
        %699 = vmatpush2.msra.mxu0 0.0
        %700 = vmatprep.subr.mxu0 0.0
        %701 = vmatpush2.msra.mxu0 0.0
        %702 = vmatprep.subr.mxu0 0.0
        %703 = vmatpush2.msra.mxu0 0.0
        %704 = vmatprep.mubr.f32.mxu0 0.0
        %705 = vmatmul.mubr.f32.gmra.mxu0 %v560
        %v706 = vpop.f32.mrf.mxu0
        %v707 = vadd.f32 0.0, %v706
        %v708 = vpop.f32.mrf.mxu0
        %v709 = vadd.f32 0.0, %v708
        %710 = vdwg.mxu0
        %v711 = vadd.f32 %v565, %v636
        %v712 = vadd.f32 %v566, %v638
        %v713 = vadd.f32 %v567, %v707
        %v714 = vadd.f32 %v568, %v709
        %v715 = vxor.u32 %v711, 2147483648
        %v716 = vmul.f32 %v715, 1.442695
        %v717 = vpow.pop %v716
        %v718 = vadd.f32 %v717, 1.0
        %v719 = vrcp.pop %v718
        %v720 = vmul.f32 1.0, %v719
        %v721 = vxor.u32 %v712, 2147483648
        %v722 = vmul.f32 %v721, 1.442695
        %v723 = vpow.pop %v722
        %v724 = vadd.f32 %v723, 1.0
        %v725 = vrcp.pop %v724
        %v726 = vmul.f32 1.0, %v725
        %v727 = vtanh.pop %v713
        %v728 = vxor.u32 %v714, 2147483648
        %v729 = vmul.f32 %v728, 1.442695
        %v730 = vpow.pop %v729
        %v731 = vadd.f32 %v730, 1.0
        %v732 = vrcp.pop %v731
        %v733 = vmul.f32 1.0, %v732
        %v734 = vmul.f32 %v726, %v561
        %v735 = vmul.f32 %v720, %v727
        %v736 = vadd.f32 %v734, %v735
        %v737 = vtanh.pop %v736
        %v738 = vmul.f32 %v733, %v737
        %739 = vst [vmem:[%s230] sm:$0xff] %v738
        %s740 = smul.u32 1, 4
        %s741 = smul.addr %s740, 8
        %s742 = scalar_lea.vmem [#allocation4], %s741
        %v743 = vld [vmem:[%s742] sm:$0xff]
        %v744 = vld [vmem:[%s742 + $0x8] sm:$0xff]
        %v745 = vld [vmem:[%s742 + $0x10] sm:$0xff]
        %v746 = vld [vmem:[%s742 + $0x18] sm:$0xff]
        %747 = vmatprep.subr.mxu0 %v557
        %748 = vmatpush1.msra.mxu0 %v556
        %749 = vmatprep.subr.mxu0 %v553
        %750 = vmatpush1.msra.mxu0 %v552
        %751 = vmatprep.subr.mxu0 %v549
        %752 = vmatpush1.msra.mxu0 %v548
        %753 = vmatprep.subr.mxu0 %v545
        %754 = vmatpush1.msra.mxu0 %v544
        %755 = vmatprep.subr.mxu0 %v541
        %756 = vmatpush1.msra.mxu0 %v540
        %757 = vmatprep.subr.mxu0 %v537
        %758 = vmatpush1.msra.mxu0 %v536
        %759 = vmatprep.subr.mxu0 %v533
        %760 = vmatpush1.msra.mxu0 %v532
        %761 = vmatprep.subr.mxu0 %v529
        %762 = vmatpush1.msra.mxu0 %v528
        %763 = vmatprep.subr.mxu0 %v525
        %764 = vmatpush1.msra.mxu0 %v524
        %765 = vmatprep.subr.mxu0 %v521
        %766 = vmatpush1.msra.mxu0 %v520
        %767 = vmatprep.subr.mxu0 %v517
        %768 = vmatpush1.msra.mxu0 %v516
        %769 = vmatprep.subr.mxu0 %v513
        %770 = vmatpush1.msra.mxu0 %v512
        %771 = vmatprep.subr.mxu0 %v509
        %772 = vmatpush1.msra.mxu0 %v508
        %773 = vmatprep.subr.mxu0 %v505
        %774 = vmatpush1.msra.mxu0 %v504
        %775 = vmatprep.subr.mxu0 %v501
        %776 = vmatpush1.msra.mxu0 %v500
        %777 = vmatprep.subr.mxu0 %v497
        %778 = vmatpush1.msra.mxu0 %v496
        %779 = vmatprep.subr.mxu0 0.0
        %780 = vmatpush2.msra.mxu0 0.0
        %781 = vmatprep.subr.mxu0 0.0
        %782 = vmatpush2.msra.mxu0 0.0
        %783 = vmatprep.subr.mxu0 0.0
        %784 = vmatpush2.msra.mxu0 0.0
        %785 = vmatprep.subr.mxu0 0.0
        %786 = vmatpush2.msra.mxu0 0.0
        %787 = vmatprep.subr.mxu0 0.0
        %788 = vmatpush2.msra.mxu0 0.0
        %789 = vmatprep.subr.mxu0 0.0
        %790 = vmatpush2.msra.mxu0 0.0
        %791 = vmatprep.subr.mxu0 0.0
        %792 = vmatpush2.msra.mxu0 0.0
        %793 = vmatprep.subr.mxu0 0.0
        %794 = vmatpush2.msra.mxu0 0.0
        %795 = vmatprep.subr.mxu0 0.0
        %796 = vmatpush2.msra.mxu0 0.0
        %797 = vmatprep.subr.mxu0 0.0
        %798 = vmatpush2.msra.mxu0 0.0
        %799 = vmatprep.subr.mxu0 0.0
        %800 = vmatpush2.msra.mxu0 0.0
        %801 = vmatprep.subr.mxu0 0.0
        %802 = vmatpush2.msra.mxu0 0.0
        %803 = vmatprep.subr.mxu0 0.0
        %804 = vmatpush2.msra.mxu0 0.0
        %805 = vmatprep.subr.mxu0 0.0
        %806 = vmatpush2.msra.mxu0 0.0
        %807 = vmatprep.subr.mxu0 0.0
        %808 = vmatpush2.msra.mxu0 0.0
        %809 = vmatprep.subr.mxu0 0.0
        %810 = vmatpush2.msra.mxu0 0.0
        %811 = vmatprep.mubr.f32.mxu0 0.0
        %812 = vmatmul.mubr.f32.gmra.mxu0 %v738
        %v813 = vpop.f32.mrf.mxu0
        %v814 = vadd.f32 0.0, %v813
        %v815 = vpop.f32.mrf.mxu0
        %v816 = vadd.f32 0.0, %v815
        %817 = vdwg.mxu0
        %818 = vmatprep.subr.mxu0 %v559
        %819 = vmatpush1.msra.mxu0 %v558
        %820 = vmatprep.subr.mxu0 %v555
        %821 = vmatpush1.msra.mxu0 %v554
        %822 = vmatprep.subr.mxu0 %v551
        %823 = vmatpush1.msra.mxu0 %v550
        %824 = vmatprep.subr.mxu0 %v547
        %825 = vmatpush1.msra.mxu0 %v546
        %826 = vmatprep.subr.mxu0 %v543
        %827 = vmatpush1.msra.mxu0 %v542
        %828 = vmatprep.subr.mxu0 %v539
        %829 = vmatpush1.msra.mxu0 %v538
        %830 = vmatprep.subr.mxu0 %v535
        %831 = vmatpush1.msra.mxu0 %v534
        %832 = vmatprep.subr.mxu0 %v531
        %833 = vmatpush1.msra.mxu0 %v530
        %834 = vmatprep.subr.mxu0 %v527
        %835 = vmatpush1.msra.mxu0 %v526
        %836 = vmatprep.subr.mxu0 %v523
        %837 = vmatpush1.msra.mxu0 %v522
        %838 = vmatprep.subr.mxu0 %v519
        %839 = vmatpush1.msra.mxu0 %v518
        %840 = vmatprep.subr.mxu0 %v515
        %841 = vmatpush1.msra.mxu0 %v514
        %842 = vmatprep.subr.mxu0 %v511
        %843 = vmatpush1.msra.mxu0 %v510
        %844 = vmatprep.subr.mxu0 %v507
        %845 = vmatpush1.msra.mxu0 %v506
        %846 = vmatprep.subr.mxu0 %v503
        %847 = vmatpush1.msra.mxu0 %v502
        %848 = vmatprep.subr.mxu0 %v499
        %849 = vmatpush1.msra.mxu0 %v498
        %850 = vmatprep.subr.mxu0 0.0
        %851 = vmatpush2.msra.mxu0 0.0
        %852 = vmatprep.subr.mxu0 0.0
        %853 = vmatpush2.msra.mxu0 0.0
        %854 = vmatprep.subr.mxu0 0.0
        %855 = vmatpush2.msra.mxu0 0.0
        %856 = vmatprep.subr.mxu0 0.0
        %857 = vmatpush2.msra.mxu0 0.0
        %858 = vmatprep.subr.mxu0 0.0
        %859 = vmatpush2.msra.mxu0 0.0
        %860 = vmatprep.subr.mxu0 0.0
        %861 = vmatpush2.msra.mxu0 0.0
        %862 = vmatprep.subr.mxu0 0.0
        %863 = vmatpush2.msra.mxu0 0.0
        %864 = vmatprep.subr.mxu0 0.0
        %865 = vmatpush2.msra.mxu0 0.0
        %866 = vmatprep.subr.mxu0 0.0
        %867 = vmatpush2.msra.mxu0 0.0
        %868 = vmatprep.subr.mxu0 0.0
        %869 = vmatpush2.msra.mxu0 0.0
        %870 = vmatprep.subr.mxu0 0.0
        %871 = vmatpush2.msra.mxu0 0.0
        %872 = vmatprep.subr.mxu0 0.0
        %873 = vmatpush2.msra.mxu0 0.0
        %874 = vmatprep.subr.mxu0 0.0
        %875 = vmatpush2.msra.mxu0 0.0
        %876 = vmatprep.subr.mxu0 0.0
        %877 = vmatpush2.msra.mxu0 0.0
        %878 = vmatprep.subr.mxu0 0.0
        %879 = vmatpush2.msra.mxu0 0.0
        %880 = vmatprep.subr.mxu0 0.0
        %881 = vmatpush2.msra.mxu0 0.0
        %882 = vmatprep.mubr.f32.mxu0 0.0
        %883 = vmatmul.mubr.f32.gmra.mxu0 %v738
        %v884 = vpop.f32.mrf.mxu0
        %v885 = vadd.f32 0.0, %v884
        %v886 = vpop.f32.mrf.mxu0
        %v887 = vadd.f32 0.0, %v886
        %888 = vdwg.mxu0
        %v889 = vadd.f32 %v743, %v814
        %v890 = vadd.f32 %v744, %v816
        %v891 = vadd.f32 %v745, %v885
        %v892 = vadd.f32 %v746, %v887
        %v893 = vxor.u32 %v889, 2147483648
        %v894 = vmul.f32 %v893, 1.442695
        %v895 = vpow.pop %v894
        %v896 = vadd.f32 %v895, 1.0
        %v897 = vrcp.pop %v896
        %v898 = vmul.f32 1.0, %v897
        %v899 = vxor.u32 %v890, 2147483648
        %v900 = vmul.f32 %v899, 1.442695
        %v901 = vpow.pop %v900
        %v902 = vadd.f32 %v901, 1.0
        %v903 = vrcp.pop %v902
        %v904 = vmul.f32 1.0, %v903
        %v905 = vtanh.pop %v891
        %v906 = vxor.u32 %v892, 2147483648
        %v907 = vmul.f32 %v906, 1.442695
        %v908 = vpow.pop %v907
        %v909 = vadd.f32 %v908, 1.0
        %v910 = vrcp.pop %v909
        %v911 = vmul.f32 1.0, %v910
        %v912 = vmul.f32 %v904, %v736
        %v913 = vmul.f32 %v898, %v905
        %v914 = vadd.f32 %v912, %v913
        %v915 = vtanh.pop %v914
        %v916 = vmul.f32 %v911, %v915
        %s917 = scalar_lea.vmem %s230, 8 [#allocation8]
        %918 = vst [vmem:[%s917] sm:$0xff] %v916
        %s919 = smul.u32 2, 4
        %s920 = smul.addr %s919, 8
        %s921 = scalar_lea.vmem [#allocation4], %s920
        %v922 = vld [vmem:[%s921] sm:$0xff]
        %v923 = vld [vmem:[%s921 + $0x8] sm:$0xff]
        %v924 = vld [vmem:[%s921 + $0x10] sm:$0xff]
        %v925 = vld [vmem:[%s921 + $0x18] sm:$0xff]
        %926 = vmatprep.subr.mxu0 %v557
        %927 = vmatpush1.msra.mxu0 %v556
        %928 = vmatprep.subr.mxu0 %v553
        %929 = vmatpush1.msra.mxu0 %v552
        %930 = vmatprep.subr.mxu0 %v549
        %931 = vmatpush1.msra.mxu0 %v548
        %932 = vmatprep.subr.mxu0 %v545
        %933 = vmatpush1.msra.mxu0 %v544
        %934 = vmatprep.subr.mxu0 %v541
        %935 = vmatpush1.msra.mxu0 %v540
        %936 = vmatprep.subr.mxu0 %v537
        %937 = vmatpush1.msra.mxu0 %v536
        %938 = vmatprep.subr.mxu0 %v533
        %939 = vmatpush1.msra.mxu0 %v532
        %940 = vmatprep.subr.mxu0 %v529
        %941 = vmatpush1.msra.mxu0 %v528
        %942 = vmatprep.subr.mxu0 %v525
        %943 = vmatpush1.msra.mxu0 %v524
        %944 = vmatprep.subr.mxu0 %v521
        %945 = vmatpush1.msra.mxu0 %v520
        %946 = vmatprep.subr.mxu0 %v517
        %947 = vmatpush1.msra.mxu0 %v516
        %948 = vmatprep.subr.mxu0 %v513
        %949 = vmatpush1.msra.mxu0 %v512
        %950 = vmatprep.subr.mxu0 %v509
        %951 = vmatpush1.msra.mxu0 %v508
        %952 = vmatprep.subr.mxu0 %v505
        %953 = vmatpush1.msra.mxu0 %v504
        %954 = vmatprep.subr.mxu0 %v501
        %955 = vmatpush1.msra.mxu0 %v500
        %956 = vmatprep.subr.mxu0 %v497
        %957 = vmatpush1.msra.mxu0 %v496
        %958 = vmatprep.subr.mxu0 0.0
        %959 = vmatpush2.msra.mxu0 0.0
        %960 = vmatprep.subr.mxu0 0.0
        %961 = vmatpush2.msra.mxu0 0.0
        %962 = vmatprep.subr.mxu0 0.0
        %963 = vmatpush2.msra.mxu0 0.0
        %964 = vmatprep.subr.mxu0 0.0
        %965 = vmatpush2.msra.mxu0 0.0
        %966 = vmatprep.subr.mxu0 0.0
        %967 = vmatpush2.msra.mxu0 0.0
        %968 = vmatprep.subr.mxu0 0.0
        %969 = vmatpush2.msra.mxu0 0.0
        %970 = vmatprep.subr.mxu0 0.0
        %971 = vmatpush2.msra.mxu0 0.0
        %972 = vmatprep.subr.mxu0 0.0
        %973 = vmatpush2.msra.mxu0 0.0
        %974 = vmatprep.subr.mxu0 0.0
        %975 = vmatpush2.msra.mxu0 0.0
        %976 = vmatprep.subr.mxu0 0.0
        %977 = vmatpush2.msra.mxu0 0.0
        %978 = vmatprep.subr.mxu0 0.0
        %979 = vmatpush2.msra.mxu0 0.0
        %980 = vmatprep.subr.mxu0 0.0
        %981 = vmatpush2.msra.mxu0 0.0
        %982 = vmatprep.subr.mxu0 0.0
        %983 = vmatpush2.msra.mxu0 0.0
        %984 = vmatprep.subr.mxu0 0.0
        %985 = vmatpush2.msra.mxu0 0.0
        %986 = vmatprep.subr.mxu0 0.0
        %987 = vmatpush2.msra.mxu0 0.0
        %988 = vmatprep.subr.mxu0 0.0
        %989 = vmatpush2.msra.mxu0 0.0
        %990 = vmatprep.mubr.f32.mxu0 0.0
        %991 = vmatmul.mubr.f32.gmra.mxu0 %v916
        %v992 = vpop.f32.mrf.mxu0
        %v993 = vadd.f32 0.0, %v992
        %v994 = vpop.f32.mrf.mxu0
        %v995 = vadd.f32 0.0, %v994
        %996 = vdwg.mxu0
        %997 = vmatprep.subr.mxu0 %v559
        %998 = vmatpush1.msra.mxu0 %v558
        %999 = vmatprep.subr.mxu0 %v555
        %1000 = vmatpush1.msra.mxu0 %v554
        %1001 = vmatprep.subr.mxu0 %v551
        %1002 = vmatpush1.msra.mxu0 %v550
        %1003 = vmatprep.subr.mxu0 %v547
        %1004 = vmatpush1.msra.mxu0 %v546
        %1005 = vmatprep.subr.mxu0 %v543
        %1006 = vmatpush1.msra.mxu0 %v542
        %1007 = vmatprep.subr.mxu0 %v539
        %1008 = vmatpush1.msra.mxu0 %v538
        %1009 = vmatprep.subr.mxu0 %v535
        %1010 = vmatpush1.msra.mxu0 %v534
        %1011 = vmatprep.subr.mxu0 %v531
        %1012 = vmatpush1.msra.mxu0 %v530
        %1013 = vmatprep.subr.mxu0 %v527
        %1014 = vmatpush1.msra.mxu0 %v526
        %1015 = vmatprep.subr.mxu0 %v523
        %1016 = vmatpush1.msra.mxu0 %v522
        %1017 = vmatprep.subr.mxu0 %v519
        %1018 = vmatpush1.msra.mxu0 %v518
        %1019 = vmatprep.subr.mxu0 %v515
        %1020 = vmatpush1.msra.mxu0 %v514
        %1021 = vmatprep.subr.mxu0 %v511
        %1022 = vmatpush1.msra.mxu0 %v510
        %1023 = vmatprep.subr.mxu0 %v507
        %1024 = vmatpush1.msra.mxu0 %v506
        %1025 = vmatprep.subr.mxu0 %v503
        %1026 = vmatpush1.msra.mxu0 %v502
        %1027 = vmatprep.subr.mxu0 %v499
        %1028 = vmatpush1.msra.mxu0 %v498
        %1029 = vmatprep.subr.mxu0 0.0
        %1030 = vmatpush2.msra.mxu0 0.0
        %1031 = vmatprep.subr.mxu0 0.0
        %1032 = vmatpush2.msra.mxu0 0.0
        %1033 = vmatprep.subr.mxu0 0.0
        %1034 = vmatpush2.msra.mxu0 0.0
        %1035 = vmatprep.subr.mxu0 0.0
        %1036 = vmatpush2.msra.mxu0 0.0
        %1037 = vmatprep.subr.mxu0 0.0
        %1038 = vmatpush2.msra.mxu0 0.0
        %1039 = vmatprep.subr.mxu0 0.0
        %1040 = vmatpush2.msra.mxu0 0.0
        %1041 = vmatprep.subr.mxu0 0.0
        %1042 = vmatpush2.msra.mxu0 0.0
        %1043 = vmatprep.subr.mxu0 0.0
        %1044 = vmatpush2.msra.mxu0 0.0
        %1045 = vmatprep.subr.mxu0 0.0
        %1046 = vmatpush2.msra.mxu0 0.0
        %1047 = vmatprep.subr.mxu0 0.0
        %1048 = vmatpush2.msra.mxu0 0.0
        %1049 = vmatprep.subr.mxu0 0.0
        %1050 = vmatpush2.msra.mxu0 0.0
        %1051 = vmatprep.subr.mxu0 0.0
        %1052 = vmatpush2.msra.mxu0 0.0
        %1053 = vmatprep.subr.mxu0 0.0
        %1054 = vmatpush2.msra.mxu0 0.0
        %1055 = vmatprep.subr.mxu0 0.0
        %1056 = vmatpush2.msra.mxu0 0.0
        %1057 = vmatprep.subr.mxu0 0.0
        %1058 = vmatpush2.msra.mxu0 0.0
        %1059 = vmatprep.subr.mxu0 0.0
        %1060 = vmatpush2.msra.mxu0 0.0
        %1061 = vmatprep.mubr.f32.mxu0 0.0
        %1062 = vmatmul.mubr.f32.gmra.mxu0 %v916
        %v1063 = vpop.f32.mrf.mxu0
        %v1064 = vadd.f32 0.0, %v1063
        %v1065 = vpop.f32.mrf.mxu0
        %v1066 = vadd.f32 0.0, %v1065
        %1067 = vdwg.mxu0
        %v1068 = vadd.f32 %v922, %v993
        %v1069 = vadd.f32 %v923, %v995
        %v1070 = vadd.f32 %v924, %v1064
        %v1071 = vadd.f32 %v925, %v1066
        %v1072 = vxor.u32 %v1068, 2147483648
        %v1073 = vmul.f32 %v1072, 1.442695
        %v1074 = vpow.pop %v1073
        %v1075 = vadd.f32 %v1074, 1.0
        %v1076 = vrcp.pop %v1075
        %v1077 = vmul.f32 1.0, %v1076
        %v1078 = vxor.u32 %v1069, 2147483648
        %v1079 = vmul.f32 %v1078, 1.442695
        %v1080 = vpow.pop %v1079
        %v1081 = vadd.f32 %v1080, 1.0
        %v1082 = vrcp.pop %v1081
        %v1083 = vmul.f32 1.0, %v1082
        %v1084 = vtanh.pop %v1070
        %v1085 = vxor.u32 %v1071, 2147483648
        %v1086 = vmul.f32 %v1085, 1.442695
        %v1087 = vpow.pop %v1086
        %v1088 = vadd.f32 %v1087, 1.0
        %v1089 = vrcp.pop %v1088
        %v1090 = vmul.f32 1.0, %v1089
        %v1091 = vmul.f32 %v1083, %v914
        %v1092 = vmul.f32 %v1077, %v1084
        %v1093 = vadd.f32 %v1091, %v1092
        %v1094 = vtanh.pop %v1093
        %v1095 = vmul.f32 %v1090, %v1094
        %s1096 = scalar_lea.vmem %s230, 16 [#allocation8]
        %1097 = vst [vmem:[%s1096] sm:$0xff] %v1095
        %s1098 = smul.u32 3, 4
        %s1099 = smul.addr %s1098, 8
        %s1100 = scalar_lea.vmem [#allocation4], %s1099
        %v1101 = vld [vmem:[%s1100] sm:$0xff]
        %v1102 = vld [vmem:[%s1100 + $0x8] sm:$0xff]
        %v1103 = vld [vmem:[%s1100 + $0x10] sm:$0xff]
        %v1104 = vld [vmem:[%s1100 + $0x18] sm:$0xff]
        %1105 = vmatprep.subr.mxu0 %v557
        %1106 = vmatpush1.msra.mxu0 %v556
        %1107 = vmatprep.subr.mxu0 %v553
        %1108 = vmatpush1.msra.mxu0 %v552
        %1109 = vmatprep.subr.mxu0 %v549
        %1110 = vmatpush1.msra.mxu0 %v548
        %1111 = vmatprep.subr.mxu0 %v545
        %1112 = vmatpush1.msra.mxu0 %v544
        %1113 = vmatprep.subr.mxu0 %v541
        %1114 = vmatpush1.msra.mxu0 %v540
        %1115 = vmatprep.subr.mxu0 %v537
        %1116 = vmatpush1.msra.mxu0 %v536
        %1117 = vmatprep.subr.mxu0 %v533
        %1118 = vmatpush1.msra.mxu0 %v532
        %1119 = vmatprep.subr.mxu0 %v529
        %1120 = vmatpush1.msra.mxu0 %v528
        %1121 = vmatprep.subr.mxu0 %v525
        %1122 = vmatpush1.msra.mxu0 %v524
        %1123 = vmatprep.subr.mxu0 %v521
        %1124 = vmatpush1.msra.mxu0 %v520
        %1125 = vmatprep.subr.mxu0 %v517
        %1126 = vmatpush1.msra.mxu0 %v516
        %1127 = vmatprep.subr.mxu0 %v513
        %1128 = vmatpush1.msra.mxu0 %v512
        %1129 = vmatprep.subr.mxu0 %v509
        %1130 = vmatpush1.msra.mxu0 %v508
        %1131 = vmatprep.subr.mxu0 %v505
        %1132 = vmatpush1.msra.mxu0 %v504
        %1133 = vmatprep.subr.mxu0 %v501
        %1134 = vmatpush1.msra.mxu0 %v500
        %1135 = vmatprep.subr.mxu0 %v497
        %1136 = vmatpush1.msra.mxu0 %v496
        %1137 = vmatprep.subr.mxu0 0.0
        %1138 = vmatpush2.msra.mxu0 0.0
        %1139 = vmatprep.subr.mxu0 0.0
        %1140 = vmatpush2.msra.mxu0 0.0
        %1141 = vmatprep.subr.mxu0 0.0
        %1142 = vmatpush2.msra.mxu0 0.0
        %1143 = vmatprep.subr.mxu0 0.0
        %1144 = vmatpush2.msra.mxu0 0.0
        %1145 = vmatprep.subr.mxu0 0.0
        %1146 = vmatpush2.msra.mxu0 0.0
        %1147 = vmatprep.subr.mxu0 0.0
        %1148 = vmatpush2.msra.mxu0 0.0
        %1149 = vmatprep.subr.mxu0 0.0
        %1150 = vmatpush2.msra.mxu0 0.0
        %1151 = vmatprep.subr.mxu0 0.0
        %1152 = vmatpush2.msra.mxu0 0.0
        %1153 = vmatprep.subr.mxu0 0.0
        %1154 = vmatpush2.msra.mxu0 0.0
        %1155 = vmatprep.subr.mxu0 0.0
        %1156 = vmatpush2.msra.mxu0 0.0
        %1157 = vmatprep.subr.mxu0 0.0
        %1158 = vmatpush2.msra.mxu0 0.0
        %1159 = vmatprep.subr.mxu0 0.0
        %1160 = vmatpush2.msra.mxu0 0.0
        %1161 = vmatprep.subr.mxu0 0.0
        %1162 = vmatpush2.msra.mxu0 0.0
        %1163 = vmatprep.subr.mxu0 0.0
        %1164 = vmatpush2.msra.mxu0 0.0
        %1165 = vmatprep.subr.mxu0 0.0
        %1166 = vmatpush2.msra.mxu0 0.0
        %1167 = vmatprep.subr.mxu0 0.0
        %1168 = vmatpush2.msra.mxu0 0.0
        %1169 = vmatprep.mubr.f32.mxu0 0.0
        %1170 = vmatmul.mubr.f32.gmra.mxu0 %v1095
        %v1171 = vpop.f32.mrf.mxu0
        %v1172 = vadd.f32 0.0, %v1171
        %v1173 = vpop.f32.mrf.mxu0
        %v1174 = vadd.f32 0.0, %v1173
        %1175 = vdwg.mxu0
        %1176 = vmatprep.subr.mxu0 %v559
        %1177 = vmatpush1.msra.mxu0 %v558
        %1178 = vmatprep.subr.mxu0 %v555
        %1179 = vmatpush1.msra.mxu0 %v554
        %1180 = vmatprep.subr.mxu0 %v551
        %1181 = vmatpush1.msra.mxu0 %v550
        %1182 = vmatprep.subr.mxu0 %v547
        %1183 = vmatpush1.msra.mxu0 %v546
        %1184 = vmatprep.subr.mxu0 %v543
        %1185 = vmatpush1.msra.mxu0 %v542
        %1186 = vmatprep.subr.mxu0 %v539
        %1187 = vmatpush1.msra.mxu0 %v538
        %1188 = vmatprep.subr.mxu0 %v535
        %1189 = vmatpush1.msra.mxu0 %v534
        %1190 = vmatprep.subr.mxu0 %v531
        %1191 = vmatpush1.msra.mxu0 %v530
        %1192 = vmatprep.subr.mxu0 %v527
        %1193 = vmatpush1.msra.mxu0 %v526
        %1194 = vmatprep.subr.mxu0 %v523
        %1195 = vmatpush1.msra.mxu0 %v522
        %1196 = vmatprep.subr.mxu0 %v519
        %1197 = vmatpush1.msra.mxu0 %v518
        %1198 = vmatprep.subr.mxu0 %v515
        %1199 = vmatpush1.msra.mxu0 %v514
        %1200 = vmatprep.subr.mxu0 %v511
        %1201 = vmatpush1.msra.mxu0 %v510
        %1202 = vmatprep.subr.mxu0 %v507
        %1203 = vmatpush1.msra.mxu0 %v506
        %1204 = vmatprep.subr.mxu0 %v503
        %1205 = vmatpush1.msra.mxu0 %v502
        %1206 = vmatprep.subr.mxu0 %v499
        %1207 = vmatpush1.msra.mxu0 %v498
        %1208 = vmatprep.subr.mxu0 0.0
        %1209 = vmatpush2.msra.mxu0 0.0
        %1210 = vmatprep.subr.mxu0 0.0
        %1211 = vmatpush2.msra.mxu0 0.0
        %1212 = vmatprep.subr.mxu0 0.0
        %1213 = vmatpush2.msra.mxu0 0.0
        %1214 = vmatprep.subr.mxu0 0.0
        %1215 = vmatpush2.msra.mxu0 0.0
        %1216 = vmatprep.subr.mxu0 0.0
        %1217 = vmatpush2.msra.mxu0 0.0
        %1218 = vmatprep.subr.mxu0 0.0
        %1219 = vmatpush2.msra.mxu0 0.0
        %1220 = vmatprep.subr.mxu0 0.0
        %1221 = vmatpush2.msra.mxu0 0.0
        %1222 = vmatprep.subr.mxu0 0.0
        %1223 = vmatpush2.msra.mxu0 0.0
        %1224 = vmatprep.subr.mxu0 0.0
        %1225 = vmatpush2.msra.mxu0 0.0
        %1226 = vmatprep.subr.mxu0 0.0
        %1227 = vmatpush2.msra.mxu0 0.0
        %1228 = vmatprep.subr.mxu0 0.0
        %1229 = vmatpush2.msra.mxu0 0.0
        %1230 = vmatprep.subr.mxu0 0.0
        %1231 = vmatpush2.msra.mxu0 0.0
        %1232 = vmatprep.subr.mxu0 0.0
        %1233 = vmatpush2.msra.mxu0 0.0
        %1234 = vmatprep.subr.mxu0 0.0
        %1235 = vmatpush2.msra.mxu0 0.0
        %1236 = vmatprep.subr.mxu0 0.0
        %1237 = vmatpush2.msra.mxu0 0.0
        %1238 = vmatprep.subr.mxu0 0.0
        %1239 = vmatpush2.msra.mxu0 0.0
        %1240 = vmatprep.mubr.f32.mxu0 0.0
        %1241 = vmatmul.mubr.f32.gmra.mxu0 %v1095
        %v1242 = vpop.f32.mrf.mxu0
        %v1243 = vadd.f32 0.0, %v1242
        %v1244 = vpop.f32.mrf.mxu0
        %v1245 = vadd.f32 0.0, %v1244
        %1246 = vdwg.mxu0
        %v1247 = vadd.f32 %v1101, %v1172
        %v1248 = vadd.f32 %v1102, %v1174
        %v1249 = vadd.f32 %v1103, %v1243
        %v1250 = vadd.f32 %v1104, %v1245
        %v1251 = vxor.u32 %v1247, 2147483648
        %v1252 = vmul.f32 %v1251, 1.442695
        %v1253 = vpow.pop %v1252
        %v1254 = vadd.f32 %v1253, 1.0
        %v1255 = vrcp.pop %v1254
        %v1256 = vmul.f32 1.0, %v1255
        %v1257 = vxor.u32 %v1248, 2147483648
        %v1258 = vmul.f32 %v1257, 1.442695
        %v1259 = vpow.pop %v1258
        %v1260 = vadd.f32 %v1259, 1.0
        %v1261 = vrcp.pop %v1260
        %v1262 = vmul.f32 1.0, %v1261
        %v1263 = vtanh.pop %v1249
        %v1264 = vxor.u32 %v1250, 2147483648
        %v1265 = vmul.f32 %v1264, 1.442695
        %v1266 = vpow.pop %v1265
        %v1267 = vadd.f32 %v1266, 1.0
        %v1268 = vrcp.pop %v1267
        %v1269 = vmul.f32 1.0, %v1268
        %v1270 = vmul.f32 %v1262, %v1093
        %v1271 = vmul.f32 %v1256, %v1263
        %v1272 = vadd.f32 %v1270, %v1271
        %v1273 = vtanh.pop %v1272
        %v1274 = vmul.f32 %v1269, %v1273
        %s1275 = scalar_lea.vmem %s230, 24 [#allocation8]
        %1276 = vst [vmem:[%s1275] sm:$0xff] %v1274
        %1277 = vst [vmem:[#allocation2] sm:$0xff] %v1274
        %1278 = vst [vmem:[#allocation3] sm:$0xff] %v1272
        %s1279 = sand.u32 %s132, 1
        %s1280 = scalar_lea.sflag [#allocation7], %s1279
        %s1281 = sand.u32 %s132, 1
        %s1282 = smul.addr %s1281, 32
        %s1283 = scalar_lea.vmem [#allocation8], %s1282
        // Predicated region
        $region45: #{tpu_custom_call.1} parent=35 // pred_check
          %p1284 = pneg %p142
        $region46: #{tpu_custom_call.1} parent=35 // pred_check_branch
          %1286 = sbr.rel (%p1284) target = $region48
        $region47: #{tpu_custom_call.1} parent=35 // pred_region
          %s1287 = smul.u32 4, %s24
          %s1289 = ssub.s32 512, 512
          %1290 = vsyncadd %s1280, %s1289
          %s1291 = smul.addr %s23, 8
          %s1292 = sadd.s32 %s1287, %s1291
          %s1293 = smul.addr %s1292, 128
          %s1294 = scalar_lea.hbm %s4, %s1293
          %s1295 = sshll.u32 %s1283, 4
          %s1296 = int_to_ptr.vmem [resolvable:$true] %s1295
          %1301 = dma.vmem_to_hbm [thread:$0]  %s1296, 512, %s1294, %s1280, 128, 128, 8
        $region48: #{tpu_custom_call.1} parent=35 // pred_fallthru
          _
      $region36: #{tpu_custom_call.1} parent=5 // pred_fallthru
        _
      %p1302 = scmp.le.s32.totalorder 2, %s14
      // Predicated region
      $region49: #{tpu_custom_call.1} parent=5 // pred_check
        %p1303 = pneg %p1302
      $region50: #{tpu_custom_call.1} parent=5 // pred_check_branch
        %1305 = sbr.rel (%p1303) target = $region52
      $region51: #{tpu_custom_call.1} parent=5 // pred_region
        %s1306 = ssub.s32 %s14, 2
        // Predicated region
        $region53: #{tpu_custom_call.1} parent=51 // pred_check
          %p1307 = pneg %p148
        $region54: #{tpu_custom_call.1} parent=51 // pred_check_branch
          %1309 = sbr.rel (%p1307) target = $region56
        $region55: #{tpu_custom_call.1} parent=51 // pred_region
          %s1310 = sand.u32 %s133, 1
          %s1311 = scalar_lea.sflag [#allocation7], %s1310
          %s1312 = sand.u32 %s133, 1
          %s1313 = smul.addr %s1312, 32
          %s1314 = scalar_lea.vmem [#allocation8], %s1313
          %1315 = dma.done %s1311, 512
        $region56: #{tpu_custom_call.1} parent=51 // pred_fallthru
          _
      $region52: #{tpu_custom_call.1} parent=5 // pred_fallthru
        _
    $region6: #{tpu_custom_call.1} parent=1 // loop_footer
      %s18 = sadd.s32 1, %s14
    $region7: #{tpu_custom_call.1} parent=1 // loop_footer_branch
      %13 = sbr.rel target = $region3
    $region8: #{tpu_custom_call.1} parent=1 // loop_exit
      _
    %1316 = vsyncpa [#allocation6], 1
    %s1317 = scalar_lea.sflag [#allocation6], 1
    %1318 = vsyncpa %s1317, 1
    %1319 = vsyncpa [#allocation7], 1
    %s1320 = scalar_lea.sflag [#allocation7], 1
    %1321 = vsyncpa %s1320, 1

</llo_original>
